<compile_context>
chip_gen: v7x
topology: tpu7x:2x2x1
jax: 0.10.0
libtpu: 0.0.40
codegen_flags: <defaults>
</compile_context>

<pallas_src>
import math

import jax
import jax.numpy as jnp
from jax.experimental import pallas as pl
from jax.experimental.pallas import tpu as pltpu


# --------------------------------- helpers -----------------------------------
def _round_up(x, m):
    return (x + m - 1) // m * m


def _vmem_limit(*blocks):
    """Scoped-VMEM limit derived from the real tile footprint (+ headroom for
    double buffering), clamped so it also fits v7x's 64 MiB physical VMEM."""
    total = 0
    for shape, dtype in blocks:
        total += math.prod(shape) * jnp.dtype(dtype).itemsize
    return int(min(48 * 1024 * 1024, max(8 * 1024 * 1024, 3 * total)))


def _pick_row_tile(m, cap=256):
    """Largest multiple-of-8 divisor of m that is <= cap (else m itself)."""
    if m <= cap:
        return m
    t = (cap // 8) * 8
    while t >= 8:
        if m % t == 0:
            return t
        t -= 8
    return m


# -------------------- fused backbone stem + 1x1 conv -------------------------
def _stem_conv_kernel(x_ref, ws_ref, wc_ref, o_ref):
    # [tm, K] @ [K, C1] -> [tm, C1]   (backbone stem projection, stand-in)
    h = jnp.dot(x_ref[...], ws_ref[...], preferred_element_type=jnp.float32)
    # 1x1 conv (bias=False) == channel matmul; intermediate stays in VMEM.
    o_ref[...] = jnp.dot(h.astype(ws_ref.dtype), wc_ref[...],
                         preferred_element_type=jnp.float32).astype(o_ref.dtype)


def stem_conv(x, ws, wc, *, row_cap=256):
    """x: [M, K] bf16, ws: [K, C1] bf16, wc: [C1, C2] bf16 -> [M, C2] bf16."""
    M, K = x.shape
    _, C1 = ws.shape
    _, C2 = wc.shape
    tm = _pick_row_tile(M, row_cap)
    blocks = [((tm, K), x.dtype), ((K, C1), ws.dtype),
              ((C1, C2), wc.dtype), ((tm, C2), jnp.bfloat16)]
    return pl.pallas_call(
        _stem_conv_kernel,
        out_shape=jax.ShapeDtypeStruct((M, C2), jnp.bfloat16),
        grid_spec=pltpu.PrefetchScalarGridSpec(
            num_scalar_prefetch=0,
            grid=(M // tm,),
            in_specs=[pl.BlockSpec((tm, K), lambda i: (i, 0)),
                      pl.BlockSpec((K, C1), lambda i: (0, 0)),
                      pl.BlockSpec((C1, C2), lambda i: (0, 0))],
            out_specs=pl.BlockSpec((tm, C2), lambda i: (i, 0))),
        compiler_params=pltpu.CompilerParams(
            dimension_semantics=("parallel",),
            vmem_limit_bytes=_vmem_limit(*blocks)),
    )(x, ws, wc)


# ------------- SparseAttnBlock stand-in fused with RoIAlign pooling ----------
# TODO(synk): SparseAttnBlock source is not provided; standing in with a
# residual spatial self-attention (non-local) block.  For production feature
# maps the [HW, HW] score matrix should be tiled flash-style; at these sizes it
# comfortably fits VMEM.
def _attn_roi_kernel(x_ref, wqkv_ref, wo_ref, wroi_ref, o_ref):
    c = wo_ref.shape[0]
    x = x_ref[0]                                              # [HW, C] bf16
    # Fused QKV projection: one MXU pass over the [C, 3C] weight.
    qkv = jnp.dot(x, wqkv_ref[...], preferred_element_type=jnp.float32)
    q = qkv[:, :c].astype(x.dtype)
    k = qkv[:, c:2 * c].astype(x.dtype)
    v = qkv[:, 2 * c:].astype(x.dtype)
    s = jax.lax.dot_general(q, k, (((1,), (1,)), ((), ())),
                            preferred_element_type=jnp.float32)
    s = s * (1.0 / math.sqrt(c))
    s = s - jnp.max(s, axis=-1, keepdims=True)
    p = jnp.exp(s)
    # EUP reciprocal keeps the divide off the VALU slot.
    p = p * pl.reciprocal(jnp.sum(p, axis=-1, keepdims=True), approx=True)
    y = jnp.dot(p.astype(x.dtype), v, preferred_element_type=jnp.float32)
    attn = x.astype(jnp.float32) + jnp.dot(y.astype(x.dtype), wo_ref[...],
                                           preferred_element_type=jnp.float32)
    # RoIAlign((1,1), 1/32, sampling_ratio=2) for this image's boxes is a tiny
    # [n, HW] @ [HW, C] matmul against ITS OWN feature map only.
    o_ref[0] = jnp.dot(wroi_ref[0], attn.astype(x.dtype),
                       preferred_element_type=jnp.float32)


def attn_roi_pool(x, wqkv, wo, w_roi):
    """x: [B, HW, C] bf16, wqkv: [C, 3C], wo: [C, C], w_roi: [B, n, HW]."""
    B, HW, C = x.shape
    _, n, _ = w_roi.shape
    blocks = [((1, HW, C), x.dtype), ((C, 3 * C), wqkv.dtype),
              ((C, C), wo.dtype), ((1, n, HW), w_roi.dtype),
              ((1, n, C), jnp.float32), ((HW, 3 * C), jnp.float32)]
    return pl.pallas_call(
        _attn_roi_kernel,
        out_shape=jax.ShapeDtypeStruct((B, n, C), jnp.float32),
        grid_spec=pltpu.PrefetchScalarGridSpec(
            num_scalar_prefetch=0,
            grid=(B,),
            in_specs=[pl.BlockSpec((1, HW, C), lambda b: (b, 0, 0)),
                      pl.BlockSpec((C, 3 * C), lambda b: (0, 0)),
                      pl.BlockSpec((C, C), lambda b: (0, 0)),
                      pl.BlockSpec((1, n, HW), lambda b: (b, 0, 0))],
            out_specs=pl.BlockSpec((1, n, C), lambda b: (b, 0, 0))),
        compiler_params=pltpu.CompilerParams(
            dimension_semantics=("parallel",),
            vmem_limit_bytes=_vmem_limit(*blocks)),
    )(x, wqkv, wo, w_roi)


# ------------------------ TwoMLPHead (lane-dense out) ------------------------
# TODO(synk): TwoMLPHead source not provided; implementing the torchvision-style
# head: Linear->ReLU->Linear->ReLU.  The MaxPool1d(5,5) is applied in the JAX
# wrapper so this kernel writes a lane-dense (rows%8==0, cols%128==0) slab.
def _head_kernel(x_ref, w6_ref, b6_ref, w7_ref, b7_ref, o_ref):
    h = jnp.dot(x_ref[...], w6_ref[...],
                preferred_element_type=jnp.float32) + b6_ref[...]
    h = jnp.maximum(h, 0.0)
    h = jnp.dot(h.astype(w7_ref.dtype), w7_ref[...],
                preferred_element_type=jnp.float32) + b7_ref[...]
    o_ref[...] = jnp.maximum(h, 0.0)


def mlp_head(x, w6, b6, w7, b7):
    N, C = x.shape
    C7 = w7.shape[1]
    blocks = [((N, C), x.dtype), ((C, C), w6.dtype), ((1, C), b6.dtype),
              ((C, C7), w7.dtype), ((1, C7), b7.dtype), ((N, C7), jnp.float32)]
    return pl.pallas_call(
        _head_kernel,
        out_shape=jax.ShapeDtypeStruct((N, C7), jnp.float32),
        grid_spec=pltpu.PrefetchScalarGridSpec(
            num_scalar_prefetch=0,
            grid=(1,),
            in_specs=[pl.BlockSpec((N, C), lambda i: (0, 0)),
                      pl.BlockSpec((C, C), lambda i: (0, 0)),
                      pl.BlockSpec((1, C), lambda i: (0, 0)),
                      pl.BlockSpec((C, C7), lambda i: (0, 0)),
                      pl.BlockSpec((1, C7), lambda i: (0, 0))],
            out_specs=pl.BlockSpec((N, C7), lambda i: (0, 0))),
        compiler_params=pltpu.CompilerParams(
            dimension_semantics=("arbitrary",),
            vmem_limit_bytes=_vmem_limit(*blocks)),
    )(x, w6, b6, w7, b7)


# --------------- RoIAlign((1,1), 1/32, sampling_ratio=2) weights -------------
# Bilinear interpolation weights depend only on the (tiny) box tensor, so they
# are built in glue; the channel-heavy pooling runs fused in attn_roi_pool.
def roi_align_weights(boxes, hf, wf, scale, sampling=2):
    """boxes: [B, n, 4] (x1,y1,x2,y2). Returns per-image weights [B, n, hf*wf]
    matching torchvision RoIAlign aligned=False semantics."""
    B, n, _ = boxes.shape
    b = boxes.astype(jnp.float32) * scale
    x1, y1, x2, y2 = b[..., 0], b[..., 1], b[..., 2], b[..., 3]
    roi_w = jnp.maximum(x2 - x1, 1.0)
    roi_h = jnp.maximum(y2 - y1, 1.0)
    offs = (jnp.arange(sampling, dtype=jnp.float32) + 0.5) / sampling
    sx = x1[..., None] + offs * roi_w[..., None]              # [B, n, s]
    sy = y1[..., None] + offs * roi_h[..., None]              # [B, n, s]

    def axis_w(coord, size):
        valid = (coord >= -1.0) & (coord <= float(size))
        c = jnp.clip(coord, 0.0, float(size - 1))
        grid = jnp.arange(size, dtype=jnp.float32)
        w = jnp.maximum(1.0 - jnp.abs(c[..., None] - grid), 0.0)
        return w * valid[..., None].astype(jnp.float32)

    wy = axis_w(sy, hf)                                       # [B, n, s, hf]
    wx = axis_w(sx, wf)                                       # [B, n, s, wf]
    w = jnp.einsum("bnih,bnjw->bnhw", wy, wx) / float(sampling * sampling)
    return w.reshape(B, n, hf * wf)


# --------------------------------- forward -----------------------------------
def forward(params, x, boxes, *, num_classes, pool_size=5, down=32):
    B, c_in, H, W = x.shape
    hf, wf = H // down, W // down
    n = boxes.shape[1]
    bf16 = jnp.bfloat16

    # --- backbone ---
    # TODO(synk): timm backbone is arch-dependent; stand-in = patchify(32) +
    # linear projection (stride-32 feature map matching RoIAlign's 1/32 scale).
    # Patch pixels are flattened as (ph, pw, c_in) to match stem_w's
    # (down*down*c_in, in_features) layout.
    xh = jnp.transpose(x, (0, 2, 3, 1))                       # NCHW -> NHWC
    xh = xh.reshape(B, hf, down, wf, down, c_in)
    xh = jnp.transpose(xh, (0, 1, 3, 2, 4, 5)).reshape(B * hf * wf,
                                                       down * down * c_in)
    feat = stem_conv(xh.astype(bf16),
                     params["stem_w"].astype(bf16),
                     params["conv_w"].astype(bf16))           # [B*hf*wf, mid] bf16
    mid = feat.shape[-1]
    feat = feat.reshape(B, hf * wf, mid)

    # --- interlayer (SparseAttnBlock stand-in) fused with RoIAlign pooling ---
    w_roi = roi_align_weights(boxes, hf, wf, 1.0 / down, sampling=2)
    pooled = attn_roi_pool(feat, params["wqkv"].astype(bf16),
                           params["wo"].astype(bf16),
                           w_roi.astype(bf16))                # [B, n, mid] f32
    pooled = pooled.reshape(B * n, mid)

    # --- TwoMLPHead + MaxPool1d(pool_size, stride=pool_size) ---
    N = B * n
    Np = _round_up(N, 8)                                      # sublane-dense rows
    C7 = num_classes * pool_size
    C7p = _round_up(C7, 128)                                  # lane-dense cols
    x_head = jnp.pad(pooled, ((0, Np - N), (0, 0))).astype(bf16)
    w7p = jnp.pad(params["fc7_w"], ((0, 0), (0, C7p - C7))).astype(bf16)
    b7p = jnp.pad(params["fc7_b"], ((0, 0), (0, C7p - C7)))
    h = mlp_head(x_head, params["fc6_w"].astype(bf16), params["fc6_b"],
                 w7p, b7p)                                    # [Np, C7p] f32
    # MaxPool1d over contiguous chunks of pool_size columns of the fc7 output.
    h = h[:N, :C7].reshape(N, num_classes, pool_size)
    return jnp.max(h, axis=-1)                                # [B*n, num_classes]


# ------------------------------ parameter init --------------------------------
def init_params(key, *, c_in, down, in_features, mid, num_classes, pool_size):
    ks = jax.random.split(key, 7)

    def kaiming(k, shape, fan):
        return jax.random.normal(k, shape, jnp.float32) * math.sqrt(2.0 / fan)

    p = {}
    p["stem_w"] = kaiming(ks[0], (down * down * c_in, in_features),
                          down * down * c_in)
    p["conv_w"] = kaiming(ks[1], (in_features, mid), mid)     # fan_out kaiming
    p["wqkv"] = kaiming(ks[2], (mid, 3 * mid), mid)           # fused Wq|Wk|Wv
    p["wo"] = kaiming(ks[3], (mid, mid), mid)
    p["fc6_w"] = kaiming(ks[4], (mid, mid), mid)
    p["fc6_b"] = jnp.zeros((1, mid), jnp.float32)
    p["fc7_w"] = kaiming(ks[5], (mid, num_classes * pool_size), mid)
    p["fc7_b"] = jax.random.normal(ks[6], (1, num_classes * pool_size),
                                   jnp.float32) * 0.01
    return p


if __name__ == "__main__":
    B, n_boxes, num_classes = 2, 3, 4
    c_in, img, down = 3, 64, 32
    in_features, mid, pool_size = 128, 512, 5

    key = jax.random.PRNGKey(0)
    kx, kb1, kb2, kb3, kb4, kp = jax.random.split(key, 6)

    x = jax.random.normal(kx, (B, c_in, img, img), jnp.float32)     # NCHW input
    cx = jax.random.uniform(kb1, (B, n_boxes), minval=16.0, maxval=48.0)
    cy = jax.random.uniform(kb2, (B, n_boxes), minval=16.0, maxval=48.0)
    bw = jax.random.uniform(kb3, (B, n_boxes), minval=8.0, maxval=24.0)
    bh = jax.random.uniform(kb4, (B, n_boxes), minval=8.0, maxval=24.0)
    boxes = jnp.stack([cx - bw / 2, cy - bh / 2, cx + bw / 2, cy + bh / 2],
                      axis=-1)                                      # [B, n, 4]

    params = init_params(kp, c_in=c_in, down=down, in_features=in_features,
                         mid=mid, num_classes=num_classes, pool_size=pool_size)

    out = forward(params, x, boxes, num_classes=num_classes,
                  pool_size=pool_size, down=down)
    jax.block_until_ready(out)
    assert out.shape == (B * n_boxes, num_classes)
    print("KERNEL_OK")
</pallas_src>

<mosaic_0001>
module attributes {stable_mosaic.version = 11 : i64} {
  func.func @_stem_conv_kernel(%arg0: i32, %arg1: memref<8x3072xbf16, #tpu.memory_space<vmem>>, %arg2: memref<3072x128xbf16, #tpu.memory_space<vmem>>, %arg3: memref<128x512xbf16, #tpu.memory_space<vmem>>, %arg4: memref<8x512xbf16, #tpu.memory_space<vmem>>) attributes {dimension_semantics = [#tpu.dimension_semantics<parallel>], iteration_bounds = array<i64: 1>, scalar_prefetch = 0 : i64, scratch_operands = 0 : i64, tpu.core_type = #tpu.core_type<tc>, window_params = [{transform_indices = @transform_0, window_bounds = array<i64: 8, 3072>}, {pipeline_mode = #tpu.pipeline_mode<synchronous>, transform_indices = @transform_1, window_bounds = array<i64: 3072, 128>}, {pipeline_mode = #tpu.pipeline_mode<synchronous>, transform_indices = @transform_2, window_bounds = array<i64: 128, 512>}, {transform_indices = @transform_3, window_bounds = array<i64: 8, 512>}]} {
    %c0 = arith.constant 0 : index
    %c0_0 = arith.constant 0 : index
    %0 = vector.load %arg1[%c0, %c0_0] : memref<8x3072xbf16, #tpu.memory_space<vmem>>, vector<8x3072xbf16>
    %c0_1 = arith.constant 0 : index
    %c0_2 = arith.constant 0 : index
    %1 = vector.load %arg2[%c0_1, %c0_2] : memref<3072x128xbf16, #tpu.memory_space<vmem>>, vector<3072x128xbf16>
    %cst = arith.constant dense<0.000000e+00> : vector<8x128xf32>
    %2 = tpu.matmul %0, %1, %cst {dimension_numbers = #tpu.dot_dimension_numbers<[1], [0], [0], [1], [0, 0, 1, 1], [], []>} : vector<8x3072xbf16>, vector<3072x128xbf16>, vector<8x128xf32> -> vector<8x128xf32>
    %3 = arith.truncf %2 : vector<8x128xf32> to vector<8x128xbf16>
    %c0_3 = arith.constant 0 : index
    %c0_4 = arith.constant 0 : index
    %4 = vector.load %arg3[%c0_3, %c0_4] : memref<128x512xbf16, #tpu.memory_space<vmem>>, vector<128x512xbf16>
    %cst_5 = arith.constant dense<0.000000e+00> : vector<8x512xf32>
    %5 = tpu.matmul %3, %4, %cst_5 {dimension_numbers = #tpu.dot_dimension_numbers<[1], [0], [0], [1], [0, 0, 1, 1], [], []>} : vector<8x128xbf16>, vector<128x512xbf16>, vector<8x512xf32> -> vector<8x512xf32>
    %6 = arith.truncf %5 : vector<8x512xf32> to vector<8x512xbf16>
    %c0_6 = arith.constant 0 : index
    %c0_7 = arith.constant 0 : index
    %7 = vector.load %arg4[%c0_6, %c0_7] : memref<8x512xbf16, #tpu.memory_space<vmem>>, vector<8x512xbf16>
    tpu.vector_store %arg4[%c0_6, %c0_7], %6 {strides = array<i32>} : memref<8x512xbf16, #tpu.memory_space<vmem>>, vector<8x512xbf16>,
    return
  }
  func.func @transform_0(%arg0: i32) -> (i32, i32) {
    %c0_i32 = arith.constant 0 : i32
    %c0_i32_0 = arith.constant 0 : i32
    return %arg0, %c0_i32 : i32, i32
  }
  func.func @transform_1(%arg0: i32) -> (i32, i32) {
    %c0_i32 = arith.constant 0 : i32
    %c0_i32_0 = arith.constant 0 : i32
    %c0_i32_1 = arith.constant 0 : i32
    return %c0_i32, %c0_i32_0 : i32, i32
  }
  func.func @transform_2(%arg0: i32) -> (i32, i32) {
    %c0_i32 = arith.constant 0 : i32
    %c0_i32_0 = arith.constant 0 : i32
    %c0_i32_1 = arith.constant 0 : i32
    return %c0_i32, %c0_i32_0 : i32, i32
  }
  func.func @transform_3(%arg0: i32) -> (i32, i32) {
    %c0_i32 = arith.constant 0 : i32
    %c0_i32_0 = arith.constant 0 : i32
    return %arg0, %c0_i32 : i32, i32
  }
}

</mosaic_0001>

<llo_original>
// kernel: tpu_custom_call.1
$region0: #{tpu_custom_call.1}
  #allocation0 [shape = 'u32[]', space=smem, size = 0x4, offset = 0x4, fixed_abs, tag = 'smem constant byte address 0x4 - core index']
  #allocation1 [shape = 'u32[144,128]{1,0:T(1,128)}', space=vmem, size = 0x12000, scoped, tag = 'internal scratch']
  %s0 = inlined_call_operand.hbm [shape: bf16[8,3072], index: 0, kind: input, shape index: {}]
  %s1 = inlined_call_operand.hbm [shape: bf16[3072,128], index: 1, kind: input, shape index: {}]
  %s2 = inlined_call_operand.hbm [shape: bf16[128,512], index: 2, kind: input, shape index: {}]
  %s3 = inlined_call_operand.hbm [shape: bf16[8,512], index: 3, kind: output, shape index: {}]
  %s4 = sld [smem:[#allocation0]]
  $region34: #{tpu_custom_call.1} parent=0
    _
  %s6 = ssub.s32 1, %s4
  %s7 = scalar_select 0, %s6, %s4
  $region1: #{tpu_custom_call.1} parent=0
    #allocation2 [shape = 'u8[49152]{0}', space=vmem, size = 0xc000, scoped, tag = 'input window, operand 0, single buffered']
    #allocation3 [shape = 's32[1]{0}', space=sflag, size = 0x4, scoped, tag = 'scoped memory for tpu_custom_call.1']
    #allocation4 [shape = 's32[1]{0}', space=sflag, size = 0x4, scoped, tag = 'scoped memory for tpu_custom_call.1']
    #allocation5 [shape = 'u8[786432]{0}', space=vmem, size = 0xc0000, scoped, tag = 'input window, operand 1, single buffered']
    #allocation6 [shape = 's32[1]{0}', space=sflag, size = 0x4, scoped, tag = 'scoped memory for tpu_custom_call.1']
    #allocation7 [shape = 'u8[131072]{0}', space=vmem, size = 0x20000, scoped, tag = 'input window, operand 2, single buffered']
    #allocation8 [shape = 'u8[8192]{0}', space=vmem, size = 0x2000, scoped, tag = 'output window, operand 0, single buffered']
    %8 = vsyncpa [#allocation3], 0
    %9 = vsyncpa [#allocation6], 0
    %10 = vsyncpa [#allocation4], 0
    // Predicated region
    $region2: #{tpu_custom_call.1} parent=1 // pred_check
      _
    $region3: #{tpu_custom_call.1} parent=1 // pred_check_branch
      %12 = sbr.rel (0) target = $region5
    $region4: #{tpu_custom_call.1} parent=1 // pred_region
      %s14 = ssub.s32 1536, 1536
      %15 = vsyncadd [#allocation3], %s14
      %s17 = sshll.u32 [#allocation2], 4
      %s18 = int_to_ptr.vmem [resolvable:$true] %s17
      %20 = dma.hbm_to_vmem [thread:$0]  %s0, 1536, %s18, [#allocation3]
    $region5: #{tpu_custom_call.1} parent=1 // pred_fallthru
      _
    // Predicated region
    $region6: #{tpu_custom_call.1} parent=1 // pred_check
      _
    $region7: #{tpu_custom_call.1} parent=1 // pred_check_branch
      %22 = sbr.rel (0) target = $region9
    $region8: #{tpu_custom_call.1} parent=1 // pred_region
      %s24 = ssub.s32 24576, 24576
      %25 = vsyncadd [#allocation6], %s24
      %s26 = sshll.u32 [#allocation5], 4
      %s27 = int_to_ptr.vmem [resolvable:$true] %s26
      %32 = dma.hbm_to_vmem [thread:$0]  %s1, 24576, %s27, [#allocation6], 64, 64, 4
    $region9: #{tpu_custom_call.1} parent=1 // pred_fallthru
      _
    // Predicated region
    $region10: #{tpu_custom_call.1} parent=1 // pred_check
      _
    $region11: #{tpu_custom_call.1} parent=1 // pred_check_branch
      %34 = sbr.rel (0) target = $region13
    $region12: #{tpu_custom_call.1} parent=1 // pred_region
      %s36 = ssub.s32 4096, 4096
      %37 = vsyncadd [#allocation6], %s36
      %s38 = sshll.u32 [#allocation7], 4
      %s39 = int_to_ptr.vmem [resolvable:$true] %s38
      %44 = dma.hbm_to_vmem [thread:$0]  %s2, 4096, %s39, [#allocation6], 256, 256, 16
    $region13: #{tpu_custom_call.1} parent=1 // pred_fallthru
      _
    // Predicated region
    $region14: #{tpu_custom_call.1} parent=1 // pred_check
      _
    $region15: #{tpu_custom_call.1} parent=1 // pred_check_branch
      %46 = sbr.rel (0) target = $region17
    $region16: #{tpu_custom_call.1} parent=1 // pred_region
      %47 = dma.done [#allocation3], 1536
    $region17: #{tpu_custom_call.1} parent=1 // pred_fallthru
      _
    // Predicated region
    $region18: #{tpu_custom_call.1} parent=1 // pred_check
      _
    $region19: #{tpu_custom_call.1} parent=1 // pred_check_branch
      %49 = sbr.rel (0) target = $region21
    $region20: #{tpu_custom_call.1} parent=1 // pred_region
      %50 = dma.done [#allocation6], 24576
    $region21: #{tpu_custom_call.1} parent=1 // pred_fallthru
      _
    // Predicated region
    $region22: #{tpu_custom_call.1} parent=1 // pred_check
      _
    $region23: #{tpu_custom_call.1} parent=1 // pred_check_branch
      %52 = sbr.rel (0) target = $region25
    $region24: #{tpu_custom_call.1} parent=1 // pred_region
      %53 = dma.done [#allocation6], 4096
    $region25: #{tpu_custom_call.1} parent=1 // pred_fallthru
      _
    %v55 = vld [vmem:[#allocation2] sm:$0xff]
    %v56 = vld [vmem:[#allocation2 + $0x8] sm:$0xff]
    %v57 = vld [vmem:[#allocation2 + $0x10] sm:$0xff]
    %v58 = vld [vmem:[#allocation2 + $0x18] sm:$0xff]
    %v59 = vld [vmem:[#allocation2 + $0x20] sm:$0xff]
    %v60 = vld [vmem:[#allocation2 + $0x28] sm:$0xff]
    %v61 = vld [vmem:[#allocation2 + $0x30] sm:$0xff]
    %v62 = vld [vmem:[#allocation2 + $0x38] sm:$0xff]
    %v63 = vld [vmem:[#allocation2 + $0x40] sm:$0xff]
    %v64 = vld [vmem:[#allocation2 + $0x48] sm:$0xff]
    %v65 = vld [vmem:[#allocation2 + $0x50] sm:$0xff]
    %v66 = vld [vmem:[#allocation2 + $0x58] sm:$0xff]
    %v67 = vld [vmem:[#allocation5] sm:$0xf]
    %v68 = vld [vmem:[#allocation5 + $0x4] sm:$0xf]
    %v69 = vld [vmem:[#allocation5 + $0x8] sm:$0xf]
    %v70 = vld [vmem:[#allocation5 + $0xc] sm:$0xf]
    %v71 = vld [vmem:[#allocation5 + $0x10] sm:$0xf]
    %v72 = vld [vmem:[#allocation5 + $0x14] sm:$0xf]
    %v73 = vld [vmem:[#allocation5 + $0x18] sm:$0xf]
    %v74 = vld [vmem:[#allocation5 + $0x1c] sm:$0xf]
    %v75 = vld [vmem:[#allocation5 + $0x20] sm:$0xf]
    %v76 = vld [vmem:[#allocation5 + $0x24] sm:$0xf]
    %v77 = vld [vmem:[#allocation5 + $0x28] sm:$0xf]
    %v78 = vld [vmem:[#allocation5 + $0x2c] sm:$0xf]
    %v79 = vld [vmem:[#allocation5 + $0x30] sm:$0xf]
    %v80 = vld [vmem:[#allocation5 + $0x34] sm:$0xf]
    %v81 = vld [vmem:[#allocation5 + $0x38] sm:$0xf]
    %v82 = vld [vmem:[#allocation5 + $0x3c] sm:$0xf]
    %v83 = vld [vmem:[#allocation5 + $0x40] sm:$0xf]
    %v84 = vld [vmem:[#allocation5 + $0x44] sm:$0xf]
    %v85 = vld [vmem:[#allocation5 + $0x48] sm:$0xf]
    %v86 = vld [vmem:[#allocation5 + $0x4c] sm:$0xf]
    %v87 = vld [vmem:[#allocation5 + $0x50] sm:$0xf]
    %v88 = vld [vmem:[#allocation5 + $0x54] sm:$0xf]
    %v89 = vld [vmem:[#allocation5 + $0x58] sm:$0xf]
    %v90 = vld [vmem:[#allocation5 + $0x5c] sm:$0xf]
    %v91 = vld [vmem:[#allocation5 + $0x60] sm:$0xf]
    %v92 = vld [vmem:[#allocation5 + $0x64] sm:$0xf]
    %v93 = vld [vmem:[#allocation5 + $0x68] sm:$0xf]
    %v94 = vld [vmem:[#allocation5 + $0x6c] sm:$0xf]
    %v95 = vld [vmem:[#allocation5 + $0x70] sm:$0xf]
    %v96 = vld [vmem:[#allocation5 + $0x74] sm:$0xf]
    %v97 = vld [vmem:[#allocation5 + $0x78] sm:$0xf]
    %v98 = vld [vmem:[#allocation5 + $0x7c] sm:$0xf]
    %v99 = vld [vmem:[#allocation5 + $0x80] sm:$0xf]
    %v100 = vld [vmem:[#allocation5 + $0x84] sm:$0xf]
    %v101 = vld [vmem:[#allocation5 + $0x88] sm:$0xf]
    %v102 = vld [vmem:[#allocation5 + $0x8c] sm:$0xf]
    %v103 = vld [vmem:[#allocation5 + $0x90] sm:$0xf]
    %v104 = vld [vmem:[#allocation5 + $0x94] sm:$0xf]
    %v105 = vld [vmem:[#allocation5 + $0x98] sm:$0xf]
    %v106 = vld [vmem:[#allocation5 + $0x9c] sm:$0xf]
    %v107 = vld [vmem:[#allocation5 + $0xa0] sm:$0xf]
    %v108 = vld [vmem:[#allocation5 + $0xa4] sm:$0xf]
    %v109 = vld [vmem:[#allocation5 + $0xa8] sm:$0xf]
    %v110 = vld [vmem:[#allocation5 + $0xac] sm:$0xf]
    %v111 = vld [vmem:[#allocation5 + $0xb0] sm:$0xf]
    %v112 = vld [vmem:[#allocation5 + $0xb4] sm:$0xf]
    %v113 = vld [vmem:[#allocation5 + $0xb8] sm:$0xf]
    %v114 = vld [vmem:[#allocation5 + $0xbc] sm:$0xf]
    %v115 = vld [vmem:[#allocation5 + $0xc0] sm:$0xf]
    %v116 = vld [vmem:[#allocation5 + $0xc4] sm:$0xf]
    %v117 = vld [vmem:[#allocation5 + $0xc8] sm:$0xf]
    %v118 = vld [vmem:[#allocation5 + $0xcc] sm:$0xf]
    %v119 = vld [vmem:[#allocation5 + $0xd0] sm:$0xf]
    %v120 = vld [vmem:[#allocation5 + $0xd4] sm:$0xf]
    %v121 = vld [vmem:[#allocation5 + $0xd8] sm:$0xf]
    %v122 = vld [vmem:[#allocation5 + $0xdc] sm:$0xf]
    %v123 = vld [vmem:[#allocation5 + $0xe0] sm:$0xf]
    %v124 = vld [vmem:[#allocation5 + $0xe4] sm:$0xf]
    %v125 = vld [vmem:[#allocation5 + $0xe8] sm:$0xf]
    %v126 = vld [vmem:[#allocation5 + $0xec] sm:$0xf]
    %v127 = vld [vmem:[#allocation5 + $0xf0] sm:$0xf]
    %v128 = vld [vmem:[#allocation5 + $0xf4] sm:$0xf]
    %v129 = vld [vmem:[#allocation5 + $0xf8] sm:$0xf]
    %v130 = vld [vmem:[#allocation5 + $0xfc] sm:$0xf]
    %v131 = vld [vmem:[#allocation5 + $0x100] sm:$0xf]
    %v132 = vld [vmem:[#allocation5 + $0x104] sm:$0xf]
    %v133 = vld [vmem:[#allocation5 + $0x108] sm:$0xf]
    %v134 = vld [vmem:[#allocation5 + $0x10c] sm:$0xf]
    %v135 = vld [vmem:[#allocation5 + $0x110] sm:$0xf]
    %v136 = vld [vmem:[#allocation5 + $0x114] sm:$0xf]
    %v137 = vld [vmem:[#allocation5 + $0x118] sm:$0xf]
    %v138 = vld [vmem:[#allocation5 + $0x11c] sm:$0xf]
    %v139 = vld [vmem:[#allocation5 + $0x120] sm:$0xf]
    %v140 = vld [vmem:[#allocation5 + $0x124] sm:$0xf]
    %v141 = vld [vmem:[#allocation5 + $0x128] sm:$0xf]
    %v142 = vld [vmem:[#allocation5 + $0x12c] sm:$0xf]
    %v143 = vld [vmem:[#allocation5 + $0x130] sm:$0xf]
    %v144 = vld [vmem:[#allocation5 + $0x134] sm:$0xf]
    %v145 = vld [vmem:[#allocation5 + $0x138] sm:$0xf]
    %v146 = vld [vmem:[#allocation5 + $0x13c] sm:$0xf]
    %v147 = vld [vmem:[#allocation5 + $0x140] sm:$0xf]
    %v148 = vld [vmem:[#allocation5 + $0x144] sm:$0xf]
    %v149 = vld [vmem:[#allocation5 + $0x148] sm:$0xf]
    %v150 = vld [vmem:[#allocation5 + $0x14c] sm:$0xf]
    %v151 = vld [vmem:[#allocation5 + $0x150] sm:$0xf]
    %v152 = vld [vmem:[#allocation5 + $0x154] sm:$0xf]
    %v153 = vld [vmem:[#allocation5 + $0x158] sm:$0xf]
    %v154 = vld [vmem:[#allocation5 + $0x15c] sm:$0xf]
    %v155 = vld [vmem:[#allocation5 + $0x160] sm:$0xf]
    %v156 = vld [vmem:[#allocation5 + $0x164] sm:$0xf]
    %v157 = vld [vmem:[#allocation5 + $0x168] sm:$0xf]
    %v158 = vld [vmem:[#allocation5 + $0x16c] sm:$0xf]
    %v159 = vld [vmem:[#allocation5 + $0x170] sm:$0xf]
    %v160 = vld [vmem:[#allocation5 + $0x174] sm:$0xf]
    %v161 = vld [vmem:[#allocation5 + $0x178] sm:$0xf]
    %v162 = vld [vmem:[#allocation5 + $0x17c] sm:$0xf]
    %v163 = vld [vmem:[#allocation5 + $0x180] sm:$0xf]
    %v164 = vld [vmem:[#allocation5 + $0x184] sm:$0xf]
    %v165 = vld [vmem:[#allocation5 + $0x188] sm:$0xf]
    %v166 = vld [vmem:[#allocation5 + $0x18c] sm:$0xf]
    %v167 = vld [vmem:[#allocation5 + $0x190] sm:$0xf]
    %v168 = vld [vmem:[#allocation5 + $0x194] sm:$0xf]
    %v169 = vld [vmem:[#allocation5 + $0x198] sm:$0xf]
    %v170 = vld [vmem:[#allocation5 + $0x19c] sm:$0xf]
    %v171 = vld [vmem:[#allocation5 + $0x1a0] sm:$0xf]
    %v172 = vld [vmem:[#allocation5 + $0x1a4] sm:$0xf]
    %v173 = vld [vmem:[#allocation5 + $0x1a8] sm:$0xf]
    %v174 = vld [vmem:[#allocation5 + $0x1ac] sm:$0xf]
    %v175 = vld [vmem:[#allocation5 + $0x1b0] sm:$0xf]
    %v176 = vld [vmem:[#allocation5 + $0x1b4] sm:$0xf]
    %v177 = vld [vmem:[#allocation5 + $0x1b8] sm:$0xf]
    %v178 = vld [vmem:[#allocation5 + $0x1bc] sm:$0xf]
    %v179 = vld [vmem:[#allocation5 + $0x1c0] sm:$0xf]
    %v180 = vld [vmem:[#allocation5 + $0x1c4] sm:$0xf]
    %v181 = vld [vmem:[#allocation5 + $0x1c8] sm:$0xf]
    %v182 = vld [vmem:[#allocation5 + $0x1cc] sm:$0xf]
    %v183 = vld [vmem:[#allocation5 + $0x1d0] sm:$0xf]
    %v184 = vld [vmem:[#allocation5 + $0x1d4] sm:$0xf]
    %v185 = vld [vmem:[#allocation5 + $0x1d8] sm:$0xf]
    %v186 = vld [vmem:[#allocation5 + $0x1dc] sm:$0xf]
    %v187 = vld [vmem:[#allocation5 + $0x1e0] sm:$0xf]
    %v188 = vld [vmem:[#allocation5 + $0x1e4] sm:$0xf]
    %v189 = vld [vmem:[#allocation5 + $0x1e8] sm:$0xf]
    %v190 = vld [vmem:[#allocation5 + $0x1ec] sm:$0xf]
    %v191 = vld [vmem:[#allocation5 + $0x1f0] sm:$0xf]
    %v192 = vld [vmem:[#allocation5 + $0x1f4] sm:$0xf]
    %v193 = vld [vmem:[#allocation5 + $0x1f8] sm:$0xf]
    %v194 = vld [vmem:[#allocation5 + $0x1fc] sm:$0xf]
    %v195 = vld [vmem:[#allocation5 + $0x200] sm:$0xf]
    %v196 = vld [vmem:[#allocation5 + $0x204] sm:$0xf]
    %v197 = vld [vmem:[#allocation5 + $0x208] sm:$0xf]
    %v198 = vld [vmem:[#allocation5 + $0x20c] sm:$0xf]
    %v199 = vld [vmem:[#allocation5 + $0x210] sm:$0xf]
    %v200 = vld [vmem:[#allocation5 + $0x214] sm:$0xf]
    %v201 = vld [vmem:[#allocation5 + $0x218] sm:$0xf]
    %v202 = vld [vmem:[#allocation5 + $0x21c] sm:$0xf]
    %v203 = vld [vmem:[#allocation5 + $0x220] sm:$0xf]
    %v204 = vld [vmem:[#allocation5 + $0x224] sm:$0xf]
    %v205 = vld [vmem:[#allocation5 + $0x228] sm:$0xf]
    %v206 = vld [vmem:[#allocation5 + $0x22c] sm:$0xf]
    %v207 = vld [vmem:[#allocation5 + $0x230] sm:$0xf]
    %v208 = vld [vmem:[#allocation5 + $0x234] sm:$0xf]
    %v209 = vld [vmem:[#allocation5 + $0x238] sm:$0xf]
    %v210 = vld [vmem:[#allocation5 + $0x23c] sm:$0xf]
    %v211 = vld [vmem:[#allocation5 + $0x240] sm:$0xf]
    %v212 = vld [vmem:[#allocation5 + $0x244] sm:$0xf]
    %v213 = vld [vmem:[#allocation5 + $0x248] sm:$0xf]
    %v214 = vld [vmem:[#allocation5 + $0x24c] sm:$0xf]
    %v215 = vld [vmem:[#allocation5 + $0x250] sm:$0xf]
    %v216 = vld [vmem:[#allocation5 + $0x254] sm:$0xf]
    %v217 = vld [vmem:[#allocation5 + $0x258] sm:$0xf]
    %v218 = vld [vmem:[#allocation5 + $0x25c] sm:$0xf]
    %v219 = vld [vmem:[#allocation5 + $0x260] sm:$0xf]
    %v220 = vld [vmem:[#allocation5 + $0x264] sm:$0xf]
    %v221 = vld [vmem:[#allocation5 + $0x268] sm:$0xf]
    %v222 = vld [vmem:[#allocation5 + $0x26c] sm:$0xf]
    %v223 = vld [vmem:[#allocation5 + $0x270] sm:$0xf]
    %v224 = vld [vmem:[#allocation5 + $0x274] sm:$0xf]
    %v225 = vld [vmem:[#allocation5 + $0x278] sm:$0xf]
    %v226 = vld [vmem:[#allocation5 + $0x27c] sm:$0xf]
    %v227 = vld [vmem:[#allocation5 + $0x280] sm:$0xf]
    %v228 = vld [vmem:[#allocation5 + $0x284] sm:$0xf]
    %v229 = vld [vmem:[#allocation5 + $0x288] sm:$0xf]
    %v230 = vld [vmem:[#allocation5 + $0x28c] sm:$0xf]
    %v231 = vld [vmem:[#allocation5 + $0x290] sm:$0xf]
    %v232 = vld [vmem:[#allocation5 + $0x294] sm:$0xf]
    %v233 = vld [vmem:[#allocation5 + $0x298] sm:$0xf]
    %v234 = vld [vmem:[#allocation5 + $0x29c] sm:$0xf]
    %v235 = vld [vmem:[#allocation5 + $0x2a0] sm:$0xf]
    %v236 = vld [vmem:[#allocation5 + $0x2a4] sm:$0xf]
    %v237 = vld [vmem:[#allocation5 + $0x2a8] sm:$0xf]
    %v238 = vld [vmem:[#allocation5 + $0x2ac] sm:$0xf]
    %v239 = vld [vmem:[#allocation5 + $0x2b0] sm:$0xf]
    %v240 = vld [vmem:[#allocation5 + $0x2b4] sm:$0xf]
    %v241 = vld [vmem:[#allocation5 + $0x2b8] sm:$0xf]
    %v242 = vld [vmem:[#allocation5 + $0x2bc] sm:$0xf]
    %v243 = vld [vmem:[#allocation5 + $0x2c0] sm:$0xf]
    %v244 = vld [vmem:[#allocation5 + $0x2c4] sm:$0xf]
    %v245 = vld [vmem:[#allocation5 + $0x2c8] sm:$0xf]
    %v246 = vld [vmem:[#allocation5 + $0x2cc] sm:$0xf]
    %v247 = vld [vmem:[#allocation5 + $0x2d0] sm:$0xf]
    %v248 = vld [vmem:[#allocation5 + $0x2d4] sm:$0xf]
    %v249 = vld [vmem:[#allocation5 + $0x2d8] sm:$0xf]
    %v250 = vld [vmem:[#allocation5 + $0x2dc] sm:$0xf]
    %v251 = vld [vmem:[#allocation5 + $0x2e0] sm:$0xf]
    %v252 = vld [vmem:[#allocation5 + $0x2e4] sm:$0xf]
    %v253 = vld [vmem:[#allocation5 + $0x2e8] sm:$0xf]
    %v254 = vld [vmem:[#allocation5 + $0x2ec] sm:$0xf]
    %v255 = vld [vmem:[#allocation5 + $0x2f0] sm:$0xf]
    %v256 = vld [vmem:[#allocation5 + $0x2f4] sm:$0xf]
    %v257 = vld [vmem:[#allocation5 + $0x2f8] sm:$0xf]
    %v258 = vld [vmem:[#allocation5 + $0x2fc] sm:$0xf]
    %v259 = vld [vmem:[#allocation5 + $0x300] sm:$0xf]
    %v260 = vld [vmem:[#allocation5 + $0x304] sm:$0xf]
    %v261 = vld [vmem:[#allocation5 + $0x308] sm:$0xf]
    %v262 = vld [vmem:[#allocation5 + $0x30c] sm:$0xf]
    %v263 = vld [vmem:[#allocation5 + $0x310] sm:$0xf]
    %v264 = vld [vmem:[#allocation5 + $0x314] sm:$0xf]
    %v265 = vld [vmem:[#allocation5 + $0x318] sm:$0xf]
    %v266 = vld [vmem:[#allocation5 + $0x31c] sm:$0xf]
    %v267 = vld [vmem:[#allocation5 + $0x320] sm:$0xf]
    %v268 = vld [vmem:[#allocation5 + $0x324] sm:$0xf]
    %v269 = vld [vmem:[#allocation5 + $0x328] sm:$0xf]
    %v270 = vld [vmem:[#allocation5 + $0x32c] sm:$0xf]
    %v271 = vld [vmem:[#allocation5 + $0x330] sm:$0xf]
    %v272 = vld [vmem:[#allocation5 + $0x334] sm:$0xf]
    %v273 = vld [vmem:[#allocation5 + $0x338] sm:$0xf]
    %v274 = vld [vmem:[#allocation5 + $0x33c] sm:$0xf]
    %v275 = vld [vmem:[#allocation5 + $0x340] sm:$0xf]
    %v276 = vld [vmem:[#allocation5 + $0x344] sm:$0xf]
    %v277 = vld [vmem:[#allocation5 + $0x348] sm:$0xf]
    %v278 = vld [vmem:[#allocation5 + $0x34c] sm:$0xf]
    %v279 = vld [vmem:[#allocation5 + $0x350] sm:$0xf]
    %v280 = vld [vmem:[#allocation5 + $0x354] sm:$0xf]
    %v281 = vld [vmem:[#allocation5 + $0x358] sm:$0xf]
    %v282 = vld [vmem:[#allocation5 + $0x35c] sm:$0xf]
    %v283 = vld [vmem:[#allocation5 + $0x360] sm:$0xf]
    %v284 = vld [vmem:[#allocation5 + $0x364] sm:$0xf]
    %v285 = vld [vmem:[#allocation5 + $0x368] sm:$0xf]
    %v286 = vld [vmem:[#allocation5 + $0x36c] sm:$0xf]
    %v287 = vld [vmem:[#allocation5 + $0x370] sm:$0xf]
    %v288 = vld [vmem:[#allocation5 + $0x374] sm:$0xf]
    %v289 = vld [vmem:[#allocation5 + $0x378] sm:$0xf]
    %v290 = vld [vmem:[#allocation5 + $0x37c] sm:$0xf]
    %v291 = vld [vmem:[#allocation5 + $0x380] sm:$0xf]
    %v292 = vld [vmem:[#allocation5 + $0x384] sm:$0xf]
    %v293 = vld [vmem:[#allocation5 + $0x388] sm:$0xf]
    %v294 = vld [vmem:[#allocation5 + $0x38c] sm:$0xf]
    %v295 = vld [vmem:[#allocation5 + $0x390] sm:$0xf]
    %v296 = vld [vmem:[#allocation5 + $0x394] sm:$0xf]
    %v297 = vld [vmem:[#allocation5 + $0x398] sm:$0xf]
    %v298 = vld [vmem:[#allocation5 + $0x39c] sm:$0xf]
    %v299 = vld [vmem:[#allocation5 + $0x3a0] sm:$0xf]
    %v300 = vld [vmem:[#allocation5 + $0x3a4] sm:$0xf]
    %v301 = vld [vmem:[#allocation5 + $0x3a8] sm:$0xf]
    %v302 = vld [vmem:[#allocation5 + $0x3ac] sm:$0xf]
    %v303 = vld [vmem:[#allocation5 + $0x3b0] sm:$0xf]
    %v304 = vld [vmem:[#allocation5 + $0x3b4] sm:$0xf]
    %v305 = vld [vmem:[#allocation5 + $0x3b8] sm:$0xf]
    %v306 = vld [vmem:[#allocation5 + $0x3bc] sm:$0xf]
    %v307 = vld [vmem:[#allocation5 + $0x3c0] sm:$0xf]
    %v308 = vld [vmem:[#allocation5 + $0x3c4] sm:$0xf]
    %v309 = vld [vmem:[#allocation5 + $0x3c8] sm:$0xf]
    %v310 = vld [vmem:[#allocation5 + $0x3cc] sm:$0xf]
    %v311 = vld [vmem:[#allocation5 + $0x3d0] sm:$0xf]
    %v312 = vld [vmem:[#allocation5 + $0x3d4] sm:$0xf]
    %v313 = vld [vmem:[#allocation5 + $0x3d8] sm:$0xf]
    %v314 = vld [vmem:[#allocation5 + $0x3dc] sm:$0xf]
    %v315 = vld [vmem:[#allocation5 + $0x3e0] sm:$0xf]
    %v316 = vld [vmem:[#allocation5 + $0x3e4] sm:$0xf]
    %v317 = vld [vmem:[#allocation5 + $0x3e8] sm:$0xf]
    %v318 = vld [vmem:[#allocation5 + $0x3ec] sm:$0xf]
    %v319 = vld [vmem:[#allocation5 + $0x3f0] sm:$0xf]
    %v320 = vld [vmem:[#allocation5 + $0x3f4] sm:$0xf]
    %v321 = vld [vmem:[#allocation5 + $0x3f8] sm:$0xf]
    %v322 = vld [vmem:[#allocation5 + $0x3fc] sm:$0xf]
    %v323 = vld [vmem:[#allocation5 + $0x400] sm:$0xf]
    %v324 = vld [vmem:[#allocation5 + $0x404] sm:$0xf]
    %v325 = vld [vmem:[#allocation5 + $0x408] sm:$0xf]
    %v326 = vld [vmem:[#allocation5 + $0x40c] sm:$0xf]
    %v327 = vld [vmem:[#allocation5 + $0x410] sm:$0xf]
    %v328 = vld [vmem:[#allocation5 + $0x414] sm:$0xf]
    %v329 = vld [vmem:[#allocation5 + $0x418] sm:$0xf]
    %v330 = vld [vmem:[#allocation5 + $0x41c] sm:$0xf]
    %v331 = vld [vmem:[#allocation5 + $0x420] sm:$0xf]
    %v332 = vld [vmem:[#allocation5 + $0x424] sm:$0xf]
    %v333 = vld [vmem:[#allocation5 + $0x428] sm:$0xf]
    %v334 = vld [vmem:[#allocation5 + $0x42c] sm:$0xf]
    %v335 = vld [vmem:[#allocation5 + $0x430] sm:$0xf]
    %v336 = vld [vmem:[#allocation5 + $0x434] sm:$0xf]
    %v337 = vld [vmem:[#allocation5 + $0x438] sm:$0xf]
    %v338 = vld [vmem:[#allocation5 + $0x43c] sm:$0xf]
    %v339 = vld [vmem:[#allocation5 + $0x440] sm:$0xf]
    %v340 = vld [vmem:[#allocation5 + $0x444] sm:$0xf]
    %v341 = vld [vmem:[#allocation5 + $0x448] sm:$0xf]
    %v342 = vld [vmem:[#allocation5 + $0x44c] sm:$0xf]
    %v343 = vld [vmem:[#allocation5 + $0x450] sm:$0xf]
    %v344 = vld [vmem:[#allocation5 + $0x454] sm:$0xf]
    %v345 = vld [vmem:[#allocation5 + $0x458] sm:$0xf]
    %v346 = vld [vmem:[#allocation5 + $0x45c] sm:$0xf]
    %v347 = vld [vmem:[#allocation5 + $0x460] sm:$0xf]
    %v348 = vld [vmem:[#allocation5 + $0x464] sm:$0xf]
    %v349 = vld [vmem:[#allocation5 + $0x468] sm:$0xf]
    %v350 = vld [vmem:[#allocation5 + $0x46c] sm:$0xf]
    %v351 = vld [vmem:[#allocation5 + $0x470] sm:$0xf]
    %v352 = vld [vmem:[#allocation5 + $0x474] sm:$0xf]
    %v353 = vld [vmem:[#allocation5 + $0x478] sm:$0xf]
    %v354 = vld [vmem:[#allocation5 + $0x47c] sm:$0xf]
    %v355 = vld [vmem:[#allocation5 + $0x480] sm:$0xf]
    %v356 = vld [vmem:[#allocation5 + $0x484] sm:$0xf]
    %v357 = vld [vmem:[#allocation5 + $0x488] sm:$0xf]
    %v358 = vld [vmem:[#allocation5 + $0x48c] sm:$0xf]
    %v359 = vld [vmem:[#allocation5 + $0x490] sm:$0xf]
    %v360 = vld [vmem:[#allocation5 + $0x494] sm:$0xf]
    %v361 = vld [vmem:[#allocation5 + $0x498] sm:$0xf]
    %v362 = vld [vmem:[#allocation5 + $0x49c] sm:$0xf]
    %v363 = vld [vmem:[#allocation5 + $0x4a0] sm:$0xf]
    %v364 = vld [vmem:[#allocation5 + $0x4a4] sm:$0xf]
    %v365 = vld [vmem:[#allocation5 + $0x4a8] sm:$0xf]
    %v366 = vld [vmem:[#allocation5 + $0x4ac] sm:$0xf]
    %v367 = vld [vmem:[#allocation5 + $0x4b0] sm:$0xf]
    %v368 = vld [vmem:[#allocation5 + $0x4b4] sm:$0xf]
    %v369 = vld [vmem:[#allocation5 + $0x4b8] sm:$0xf]
    %v370 = vld [vmem:[#allocation5 + $0x4bc] sm:$0xf]
    %v371 = vld [vmem:[#allocation5 + $0x4c0] sm:$0xf]
    %v372 = vld [vmem:[#allocation5 + $0x4c4] sm:$0xf]
    %v373 = vld [vmem:[#allocation5 + $0x4c8] sm:$0xf]
    %v374 = vld [vmem:[#allocation5 + $0x4cc] sm:$0xf]
    %v375 = vld [vmem:[#allocation5 + $0x4d0] sm:$0xf]
    %v376 = vld [vmem:[#allocation5 + $0x4d4] sm:$0xf]
    %v377 = vld [vmem:[#allocation5 + $0x4d8] sm:$0xf]
    %v378 = vld [vmem:[#allocation5 + $0x4dc] sm:$0xf]
    %v379 = vld [vmem:[#allocation5 + $0x4e0] sm:$0xf]
    %v380 = vld [vmem:[#allocation5 + $0x4e4] sm:$0xf]
    %v381 = vld [vmem:[#allocation5 + $0x4e8] sm:$0xf]
    %v382 = vld [vmem:[#allocation5 + $0x4ec] sm:$0xf]
    %v383 = vld [vmem:[#allocation5 + $0x4f0] sm:$0xf]
    %v384 = vld [vmem:[#allocation5 + $0x4f4] sm:$0xf]
    %v385 = vld [vmem:[#allocation5 + $0x4f8] sm:$0xf]
    %v386 = vld [vmem:[#allocation5 + $0x4fc] sm:$0xf]
    %v387 = vld [vmem:[#allocation5 + $0x500] sm:$0xf]
    %v388 = vld [vmem:[#allocation5 + $0x504] sm:$0xf]
    %v389 = vld [vmem:[#allocation5 + $0x508] sm:$0xf]
    %v390 = vld [vmem:[#allocation5 + $0x50c] sm:$0xf]
    %v391 = vld [vmem:[#allocation5 + $0x510] sm:$0xf]
    %v392 = vld [vmem:[#allocation5 + $0x514] sm:$0xf]
    %v393 = vld [vmem:[#allocation5 + $0x518] sm:$0xf]
    %v394 = vld [vmem:[#allocation5 + $0x51c] sm:$0xf]
    %v395 = vld [vmem:[#allocation5 + $0x520] sm:$0xf]
    %v396 = vld [vmem:[#allocation5 + $0x524] sm:$0xf]
    %v397 = vld [vmem:[#allocation5 + $0x528] sm:$0xf]
    %v398 = vld [vmem:[#allocation5 + $0x52c] sm:$0xf]
    %v399 = vld [vmem:[#allocation5 + $0x530] sm:$0xf]
    %v400 = vld [vmem:[#allocation5 + $0x534] sm:$0xf]
    %v401 = vld [vmem:[#allocation5 + $0x538] sm:$0xf]
    %v402 = vld [vmem:[#allocation5 + $0x53c] sm:$0xf]
    %v403 = vld [vmem:[#allocation5 + $0x540] sm:$0xf]
    %v404 = vld [vmem:[#allocation5 + $0x544] sm:$0xf]
    %v405 = vld [vmem:[#allocation5 + $0x548] sm:$0xf]
    %v406 = vld [vmem:[#allocation5 + $0x54c] sm:$0xf]
    %v407 = vld [vmem:[#allocation5 + $0x550] sm:$0xf]
    %v408 = vld [vmem:[#allocation5 + $0x554] sm:$0xf]
    %v409 = vld [vmem:[#allocation5 + $0x558] sm:$0xf]
    %v410 = vld [vmem:[#allocation5 + $0x55c] sm:$0xf]
    %v411 = vld [vmem:[#allocation5 + $0x560] sm:$0xf]
    %v412 = vld [vmem:[#allocation5 + $0x564] sm:$0xf]
    %v413 = vld [vmem:[#allocation5 + $0x568] sm:$0xf]
    %v414 = vld [vmem:[#allocation5 + $0x56c] sm:$0xf]
    %v415 = vld [vmem:[#allocation5 + $0x570] sm:$0xf]
    %v416 = vld [vmem:[#allocation5 + $0x574] sm:$0xf]
    %v417 = vld [vmem:[#allocation5 + $0x578] sm:$0xf]
    %v418 = vld [vmem:[#allocation5 + $0x57c] sm:$0xf]
    %v419 = vld [vmem:[#allocation5 + $0x580] sm:$0xf]
    %v420 = vld [vmem:[#allocation5 + $0x584] sm:$0xf]
    %v421 = vld [vmem:[#allocation5 + $0x588] sm:$0xf]
    %v422 = vld [vmem:[#allocation5 + $0x58c] sm:$0xf]
    %v423 = vld [vmem:[#allocation5 + $0x590] sm:$0xf]
    %v424 = vld [vmem:[#allocation5 + $0x594] sm:$0xf]
    %v425 = vld [vmem:[#allocation5 + $0x598] sm:$0xf]
    %v426 = vld [vmem:[#allocation5 + $0x59c] sm:$0xf]
    %v427 = vld [vmem:[#allocation5 + $0x5a0] sm:$0xf]
    %v428 = vld [vmem:[#allocation5 + $0x5a4] sm:$0xf]
    %v429 = vld [vmem:[#allocation5 + $0x5a8] sm:$0xf]
    %v430 = vld [vmem:[#allocation5 + $0x5ac] sm:$0xf]
    %v431 = vld [vmem:[#allocation5 + $0x5b0] sm:$0xf]
    %v432 = vld [vmem:[#allocation5 + $0x5b4] sm:$0xf]
    %v433 = vld [vmem:[#allocation5 + $0x5b8] sm:$0xf]
    %v434 = vld [vmem:[#allocation5 + $0x5bc] sm:$0xf]
    %v435 = vld [vmem:[#allocation5 + $0x5c0] sm:$0xf]
    %v436 = vld [vmem:[#allocation5 + $0x5c4] sm:$0xf]
    %v437 = vld [vmem:[#allocation5 + $0x5c8] sm:$0xf]
    %v438 = vld [vmem:[#allocation5 + $0x5cc] sm:$0xf]
    %v439 = vld [vmem:[#allocation5 + $0x5d0] sm:$0xf]
    %v440 = vld [vmem:[#allocation5 + $0x5d4] sm:$0xf]
    %v441 = vld [vmem:[#allocation5 + $0x5d8] sm:$0xf]
    %v442 = vld [vmem:[#allocation5 + $0x5dc] sm:$0xf]
    %v443 = vld [vmem:[#allocation5 + $0x5e0] sm:$0xf]
    %v444 = vld [vmem:[#allocation5 + $0x5e4] sm:$0xf]
    %v445 = vld [vmem:[#allocation5 + $0x5e8] sm:$0xf]
    %v446 = vld [vmem:[#allocation5 + $0x5ec] sm:$0xf]
    %v447 = vld [vmem:[#allocation5 + $0x5f0] sm:$0xf]
    %v448 = vld [vmem:[#allocation5 + $0x5f4] sm:$0xf]
    %v449 = vld [vmem:[#allocation5 + $0x5f8] sm:$0xf]
    %v450 = vld [vmem:[#allocation5 + $0x5fc] sm:$0xf]
    %v463 = vunpack.c.l.b16 %v55
    %v464 = vunpack.c.h.b16 %v55
    %v465 = vunpack.c.l.b16 %v56
    %v466 = vunpack.c.h.b16 %v56
    %v467 = vunpack.c.l.b16 %v57
    %v468 = vunpack.c.h.b16 %v57
    %v469 = vunpack.c.l.b16 %v58
    %v470 = vunpack.c.h.b16 %v58
    %v471 = vunpack.c.l.b16 %v59
    %v472 = vunpack.c.h.b16 %v59
    %v473 = vunpack.c.l.b16 %v60
    %v474 = vunpack.c.h.b16 %v60
    %v475 = vunpack.c.l.b16 %v61
    %v476 = vunpack.c.h.b16 %v61
    %v477 = vunpack.c.l.b16 %v62
    %v478 = vunpack.c.h.b16 %v62
    %v479 = vunpack.c.l.b16 %v63
    %v480 = vunpack.c.h.b16 %v63
    %v481 = vunpack.c.l.b16 %v64
    %v482 = vunpack.c.h.b16 %v64
    %v483 = vunpack.c.l.b16 %v65
    %v484 = vunpack.c.h.b16 %v65
    %v485 = vunpack.c.l.b16 %v66
    %v486 = vunpack.c.h.b16 %v66
    %v487 = vpack.c.b16 %v463, %v463
    %v488 = vpack.c.b16 %v464, %v464
    %v489 = vpack.c.b16 %v465, %v465
    %v490 = vpack.c.b16 %v466, %v466
    %v491 = vpack.c.b16 %v467, %v467
    %v492 = vpack.c.b16 %v468, %v468
    %v493 = vpack.c.b16 %v469, %v469
    %v494 = vpack.c.b16 %v470, %v470
    %v495 = vpack.c.b16 %v471, %v471
    %v496 = vpack.c.b16 %v472, %v472
    %v497 = vpack.c.b16 %v473, %v473
    %v498 = vpack.c.b16 %v474, %v474
    %v499 = vpack.c.b16 %v475, %v475
    %v500 = vpack.c.b16 %v476, %v476
    %v501 = vpack.c.b16 %v477, %v477
    %v502 = vpack.c.b16 %v478, %v478
    %v503 = vpack.c.b16 %v479, %v479
    %v504 = vpack.c.b16 %v480, %v480
    %v505 = vpack.c.b16 %v481, %v481
    %v506 = vpack.c.b16 %v482, %v482
    %v507 = vpack.c.b16 %v483, %v483
    %v508 = vpack.c.b16 %v484, %v484
    %v509 = vpack.c.b16 %v485, %v485
    %v510 = vpack.c.b16 %v486, %v486
    %v919 = vunpack.c.l.b16 %v67
    %v920 = vunpack.c.l.b16 %v68
    %v921 = vunpack.c.l.b16 %v69
    %v922 = vunpack.c.l.b16 %v70
    %v923 = vunpack.c.l.b16 %v71
    %v924 = vunpack.c.l.b16 %v72
    %v925 = vunpack.c.l.b16 %v73
    %v926 = vunpack.c.l.b16 %v74
    %v927 = vunpack.c.l.b16 %v75
    %v928 = vunpack.c.l.b16 %v76
    %v929 = vunpack.c.l.b16 %v77
    %v930 = vunpack.c.l.b16 %v78
    %v931 = vunpack.c.l.b16 %v79
    %v932 = vunpack.c.l.b16 %v80
    %v933 = vunpack.c.l.b16 %v81
    %v934 = vunpack.c.l.b16 %v82
    %v935 = vunpack.c.l.b16 %v83
    %v936 = vunpack.c.l.b16 %v84
    %v937 = vunpack.c.l.b16 %v85
    %v938 = vunpack.c.l.b16 %v86
    %v939 = vunpack.c.l.b16 %v87
    %v940 = vunpack.c.l.b16 %v88
    %v941 = vunpack.c.l.b16 %v89
    %v942 = vunpack.c.l.b16 %v90
    %v943 = vunpack.c.l.b16 %v91
    %v944 = vunpack.c.l.b16 %v92
    %v945 = vunpack.c.l.b16 %v93
    %v946 = vunpack.c.l.b16 %v94
    %v947 = vunpack.c.l.b16 %v95
    %v948 = vunpack.c.l.b16 %v96
    %v949 = vunpack.c.l.b16 %v97
    %v950 = vunpack.c.l.b16 %v98
    %v951 = vunpack.c.l.b16 %v99
    %v952 = vunpack.c.l.b16 %v100
    %v953 = vunpack.c.l.b16 %v101
    %v954 = vunpack.c.l.b16 %v102
    %v955 = vunpack.c.l.b16 %v103
    %v956 = vunpack.c.l.b16 %v104
    %v957 = vunpack.c.l.b16 %v105
    %v958 = vunpack.c.l.b16 %v106
    %v959 = vunpack.c.l.b16 %v107
    %v960 = vunpack.c.l.b16 %v108
    %v961 = vunpack.c.l.b16 %v109
    %v962 = vunpack.c.l.b16 %v110
    %v963 = vunpack.c.l.b16 %v111
    %v964 = vunpack.c.l.b16 %v112
    %v965 = vunpack.c.l.b16 %v113
    %v966 = vunpack.c.l.b16 %v114
    %v967 = vunpack.c.l.b16 %v115
    %v968 = vunpack.c.l.b16 %v116
    %v969 = vunpack.c.l.b16 %v117
    %v970 = vunpack.c.l.b16 %v118
    %v971 = vunpack.c.l.b16 %v119
    %v972 = vunpack.c.l.b16 %v120
    %v973 = vunpack.c.l.b16 %v121
    %v974 = vunpack.c.l.b16 %v122
    %v975 = vunpack.c.l.b16 %v123
    %v976 = vunpack.c.l.b16 %v124
    %v977 = vunpack.c.l.b16 %v125
    %v978 = vunpack.c.l.b16 %v126
    %v979 = vunpack.c.l.b16 %v127
    %v980 = vunpack.c.l.b16 %v128
    %v981 = vunpack.c.l.b16 %v129
    %v982 = vunpack.c.l.b16 %v130
    %v983 = vunpack.c.l.b16 %v131
    %v984 = vunpack.c.l.b16 %v132
    %v985 = vunpack.c.l.b16 %v133
    %v986 = vunpack.c.l.b16 %v134
    %v987 = vunpack.c.l.b16 %v135
    %v988 = vunpack.c.l.b16 %v136
    %v989 = vunpack.c.l.b16 %v137
    %v990 = vunpack.c.l.b16 %v138
    %v991 = vunpack.c.l.b16 %v139
    %v992 = vunpack.c.l.b16 %v140
    %v993 = vunpack.c.l.b16 %v141
    %v994 = vunpack.c.l.b16 %v142
    %v995 = vunpack.c.l.b16 %v143
    %v996 = vunpack.c.l.b16 %v144
    %v997 = vunpack.c.l.b16 %v145
    %v998 = vunpack.c.l.b16 %v146
    %v999 = vunpack.c.l.b16 %v147
    %v1000 = vunpack.c.l.b16 %v148
    %v1001 = vunpack.c.l.b16 %v149
    %v1002 = vunpack.c.l.b16 %v150
    %v1003 = vunpack.c.l.b16 %v151
    %v1004 = vunpack.c.l.b16 %v152
    %v1005 = vunpack.c.l.b16 %v153
    %v1006 = vunpack.c.l.b16 %v154
    %v1007 = vunpack.c.l.b16 %v155
    %v1008 = vunpack.c.l.b16 %v156
    %v1009 = vunpack.c.l.b16 %v157
    %v1010 = vunpack.c.l.b16 %v158
    %v1011 = vunpack.c.l.b16 %v159
    %v1012 = vunpack.c.l.b16 %v160
    %v1013 = vunpack.c.l.b16 %v161
    %v1014 = vunpack.c.l.b16 %v162
    %v1015 = vunpack.c.l.b16 %v163
    %v1016 = vunpack.c.l.b16 %v164
    %v1017 = vunpack.c.l.b16 %v165
    %v1018 = vunpack.c.l.b16 %v166
    %v1019 = vunpack.c.l.b16 %v167
    %v1020 = vunpack.c.l.b16 %v168
    %v1021 = vunpack.c.l.b16 %v169
    %v1022 = vunpack.c.l.b16 %v170
    %v1023 = vunpack.c.l.b16 %v171
    %v1024 = vunpack.c.l.b16 %v172
    %v1025 = vunpack.c.l.b16 %v173
    %v1026 = vunpack.c.l.b16 %v174
    %v1027 = vunpack.c.l.b16 %v175
    %v1028 = vunpack.c.l.b16 %v176
    %v1029 = vunpack.c.l.b16 %v177
    %v1030 = vunpack.c.l.b16 %v178
    %v1031 = vunpack.c.l.b16 %v179
    %v1032 = vunpack.c.l.b16 %v180
    %v1033 = vunpack.c.l.b16 %v181
    %v1034 = vunpack.c.l.b16 %v182
    %v1035 = vunpack.c.l.b16 %v183
    %v1036 = vunpack.c.l.b16 %v184
    %v1037 = vunpack.c.l.b16 %v185
    %v1038 = vunpack.c.l.b16 %v186
    %v1039 = vunpack.c.l.b16 %v187
    %v1040 = vunpack.c.l.b16 %v188
    %v1041 = vunpack.c.l.b16 %v189
    %v1042 = vunpack.c.l.b16 %v190
    %v1043 = vunpack.c.l.b16 %v191
    %v1044 = vunpack.c.l.b16 %v192
    %v1045 = vunpack.c.l.b16 %v193
    %v1046 = vunpack.c.l.b16 %v194
    %v1047 = vunpack.c.l.b16 %v195
    %v1048 = vunpack.c.l.b16 %v196
    %v1049 = vunpack.c.l.b16 %v197
    %v1050 = vunpack.c.l.b16 %v198
    %v1051 = vunpack.c.l.b16 %v199
    %v1052 = vunpack.c.l.b16 %v200
    %v1053 = vunpack.c.l.b16 %v201
    %v1054 = vunpack.c.l.b16 %v202
    %v1055 = vunpack.c.l.b16 %v203
    %v1056 = vunpack.c.l.b16 %v204
    %v1057 = vunpack.c.l.b16 %v205
    %v1058 = vunpack.c.l.b16 %v206
    %v1059 = vunpack.c.l.b16 %v207
    %v1060 = vunpack.c.l.b16 %v208
    %v1061 = vunpack.c.l.b16 %v209
    %v1062 = vunpack.c.l.b16 %v210
    %v1063 = vunpack.c.l.b16 %v211
    %v1064 = vunpack.c.l.b16 %v212
    %v1065 = vunpack.c.l.b16 %v213
    %v1066 = vunpack.c.l.b16 %v214
    %v1067 = vunpack.c.l.b16 %v215
    %v1068 = vunpack.c.l.b16 %v216
    %v1069 = vunpack.c.l.b16 %v217
    %v1070 = vunpack.c.l.b16 %v218
    %v1071 = vunpack.c.l.b16 %v219
    %v1072 = vunpack.c.l.b16 %v220
    %v1073 = vunpack.c.l.b16 %v221
    %v1074 = vunpack.c.l.b16 %v222
    %v1075 = vunpack.c.l.b16 %v223
    %v1076 = vunpack.c.l.b16 %v224
    %v1077 = vunpack.c.l.b16 %v225
    %v1078 = vunpack.c.l.b16 %v226
    %v1079 = vunpack.c.l.b16 %v227
    %v1080 = vunpack.c.l.b16 %v228
    %v1081 = vunpack.c.l.b16 %v229
    %v1082 = vunpack.c.l.b16 %v230
    %v1083 = vunpack.c.l.b16 %v231
    %v1084 = vunpack.c.l.b16 %v232
    %v1085 = vunpack.c.l.b16 %v233
    %v1086 = vunpack.c.l.b16 %v234
    %v1087 = vunpack.c.l.b16 %v235
    %v1088 = vunpack.c.l.b16 %v236
    %v1089 = vunpack.c.l.b16 %v237
    %v1090 = vunpack.c.l.b16 %v238
    %v1091 = vunpack.c.l.b16 %v239
    %v1092 = vunpack.c.l.b16 %v240
    %v1093 = vunpack.c.l.b16 %v241
    %v1094 = vunpack.c.l.b16 %v242
    %v1095 = vunpack.c.l.b16 %v243
    %v1096 = vunpack.c.l.b16 %v244
    %v1097 = vunpack.c.l.b16 %v245
    %v1098 = vunpack.c.l.b16 %v246
    %v1099 = vunpack.c.l.b16 %v247
    %v1100 = vunpack.c.l.b16 %v248
    %v1101 = vunpack.c.l.b16 %v249
    %v1102 = vunpack.c.l.b16 %v250
    %v1103 = vunpack.c.l.b16 %v251
    %v1104 = vunpack.c.l.b16 %v252
    %v1105 = vunpack.c.l.b16 %v253
    %v1106 = vunpack.c.l.b16 %v254
    %v1107 = vunpack.c.l.b16 %v255
    %v1108 = vunpack.c.l.b16 %v256
    %v1109 = vunpack.c.l.b16 %v257
    %v1110 = vunpack.c.l.b16 %v258
    %v1111 = vunpack.c.l.b16 %v259
    %v1112 = vunpack.c.l.b16 %v260
    %v1113 = vunpack.c.l.b16 %v261
    %v1114 = vunpack.c.l.b16 %v262
    %v1115 = vunpack.c.l.b16 %v263
    %v1116 = vunpack.c.l.b16 %v264
    %v1117 = vunpack.c.l.b16 %v265
    %v1118 = vunpack.c.l.b16 %v266
    %v1119 = vunpack.c.l.b16 %v267
    %v1120 = vunpack.c.l.b16 %v268
    %v1121 = vunpack.c.l.b16 %v269
    %v1122 = vunpack.c.l.b16 %v270
    %v1123 = vunpack.c.l.b16 %v271
    %v1124 = vunpack.c.l.b16 %v272
    %v1125 = vunpack.c.l.b16 %v273
    %v1126 = vunpack.c.l.b16 %v274
    %v1127 = vunpack.c.l.b16 %v275
    %v1128 = vunpack.c.l.b16 %v276
    %v1129 = vunpack.c.l.b16 %v277
    %v1130 = vunpack.c.l.b16 %v278
    %v1131 = vunpack.c.l.b16 %v279
    %v1132 = vunpack.c.l.b16 %v280
    %v1133 = vunpack.c.l.b16 %v281
    %v1134 = vunpack.c.l.b16 %v282
    %v1135 = vunpack.c.l.b16 %v283
    %v1136 = vunpack.c.l.b16 %v284
    %v1137 = vunpack.c.l.b16 %v285
    %v1138 = vunpack.c.l.b16 %v286
    %v1139 = vunpack.c.l.b16 %v287
    %v1140 = vunpack.c.l.b16 %v288
    %v1141 = vunpack.c.l.b16 %v289
    %v1142 = vunpack.c.l.b16 %v290
    %v1143 = vunpack.c.l.b16 %v291
    %v1144 = vunpack.c.l.b16 %v292
    %v1145 = vunpack.c.l.b16 %v293
    %v1146 = vunpack.c.l.b16 %v294
    %v1147 = vunpack.c.l.b16 %v295
    %v1148 = vunpack.c.l.b16 %v296
    %v1149 = vunpack.c.l.b16 %v297
    %v1150 = vunpack.c.l.b16 %v298
    %v1151 = vunpack.c.l.b16 %v299
    %v1152 = vunpack.c.l.b16 %v300
    %v1153 = vunpack.c.l.b16 %v301
    %v1154 = vunpack.c.l.b16 %v302
    %v1155 = vunpack.c.l.b16 %v303
    %v1156 = vunpack.c.l.b16 %v304
    %v1157 = vunpack.c.l.b16 %v305
    %v1158 = vunpack.c.l.b16 %v306
    %v1159 = vunpack.c.l.b16 %v307
    %v1160 = vunpack.c.l.b16 %v308
    %v1161 = vunpack.c.l.b16 %v309
    %v1162 = vunpack.c.l.b16 %v310
    %v1163 = vunpack.c.l.b16 %v311
    %v1164 = vunpack.c.l.b16 %v312
    %v1165 = vunpack.c.l.b16 %v313
    %v1166 = vunpack.c.l.b16 %v314
    %v1167 = vunpack.c.l.b16 %v315
    %v1168 = vunpack.c.l.b16 %v316
    %v1169 = vunpack.c.l.b16 %v317
    %v1170 = vunpack.c.l.b16 %v318
    %v1171 = vunpack.c.l.b16 %v319
    %v1172 = vunpack.c.l.b16 %v320
    %v1173 = vunpack.c.l.b16 %v321
    %v1174 = vunpack.c.l.b16 %v322
    %v1175 = vunpack.c.l.b16 %v323
    %v1176 = vunpack.c.l.b16 %v324
    %v1177 = vunpack.c.l.b16 %v325
    %v1178 = vunpack.c.l.b16 %v326
    %v1179 = vunpack.c.l.b16 %v327
    %v1180 = vunpack.c.l.b16 %v328
    %v1181 = vunpack.c.l.b16 %v329
    %v1182 = vunpack.c.l.b16 %v330
    %v1183 = vunpack.c.l.b16 %v331
    %v1184 = vunpack.c.l.b16 %v332
    %v1185 = vunpack.c.l.b16 %v333
    %v1186 = vunpack.c.l.b16 %v334
    %v1187 = vunpack.c.l.b16 %v335
    %v1188 = vunpack.c.l.b16 %v336
    %v1189 = vunpack.c.l.b16 %v337
    %v1190 = vunpack.c.l.b16 %v338
    %v1191 = vunpack.c.l.b16 %v339
    %v1192 = vunpack.c.l.b16 %v340
    %v1193 = vunpack.c.l.b16 %v341
    %v1194 = vunpack.c.l.b16 %v342
    %v1195 = vunpack.c.l.b16 %v343
    %v1196 = vunpack.c.l.b16 %v344
    %v1197 = vunpack.c.l.b16 %v345
    %v1198 = vunpack.c.l.b16 %v346
    %v1199 = vunpack.c.l.b16 %v347
    %v1200 = vunpack.c.l.b16 %v348
    %v1201 = vunpack.c.l.b16 %v349
    %v1202 = vunpack.c.l.b16 %v350
    %v1203 = vunpack.c.l.b16 %v351
    %v1204 = vunpack.c.l.b16 %v352
    %v1205 = vunpack.c.l.b16 %v353
    %v1206 = vunpack.c.l.b16 %v354
    %v1207 = vunpack.c.l.b16 %v355
    %v1208 = vunpack.c.l.b16 %v356
    %v1209 = vunpack.c.l.b16 %v357
    %v1210 = vunpack.c.l.b16 %v358
    %v1211 = vunpack.c.l.b16 %v359
    %v1212 = vunpack.c.l.b16 %v360
    %v1213 = vunpack.c.l.b16 %v361
    %v1214 = vunpack.c.l.b16 %v362
    %v1215 = vunpack.c.l.b16 %v363
    %v1216 = vunpack.c.l.b16 %v364
    %v1217 = vunpack.c.l.b16 %v365
    %v1218 = vunpack.c.l.b16 %v366
    %v1219 = vunpack.c.l.b16 %v367
    %v1220 = vunpack.c.l.b16 %v368
    %v1221 = vunpack.c.l.b16 %v369
    %v1222 = vunpack.c.l.b16 %v370
    %v1223 = vunpack.c.l.b16 %v371
    %v1224 = vunpack.c.l.b16 %v372
    %v1225 = vunpack.c.l.b16 %v373
    %v1226 = vunpack.c.l.b16 %v374
    %v1227 = vunpack.c.l.b16 %v375
    %v1228 = vunpack.c.l.b16 %v376
    %v1229 = vunpack.c.l.b16 %v377
    %v1230 = vunpack.c.l.b16 %v378
    %v1231 = vunpack.c.l.b16 %v379
    %v1232 = vunpack.c.l.b16 %v380
    %v1233 = vunpack.c.l.b16 %v381
    %v1234 = vunpack.c.l.b16 %v382
    %v1235 = vunpack.c.l.b16 %v383
    %v1236 = vunpack.c.l.b16 %v384
    %v1237 = vunpack.c.l.b16 %v385
    %v1238 = vunpack.c.l.b16 %v386
    %v1239 = vunpack.c.l.b16 %v387
    %v1240 = vunpack.c.l.b16 %v388
    %v1241 = vunpack.c.l.b16 %v389
    %v1242 = vunpack.c.l.b16 %v390
    %v1243 = vunpack.c.l.b16 %v391
    %v1244 = vunpack.c.l.b16 %v392
    %v1245 = vunpack.c.l.b16 %v393
    %v1246 = vunpack.c.l.b16 %v394
    %v1247 = vunpack.c.l.b16 %v395
    %v1248 = vunpack.c.l.b16 %v396
    %v1249 = vunpack.c.l.b16 %v397
    %v1250 = vunpack.c.l.b16 %v398
    %v1251 = vunpack.c.l.b16 %v399
    %v1252 = vunpack.c.l.b16 %v400
    %v1253 = vunpack.c.l.b16 %v401
    %v1254 = vunpack.c.l.b16 %v402
    %v1255 = vunpack.c.l.b16 %v403
    %v1256 = vunpack.c.l.b16 %v404
    %v1257 = vunpack.c.l.b16 %v405
    %v1258 = vunpack.c.l.b16 %v406
    %v1259 = vunpack.c.l.b16 %v407
    %v1260 = vunpack.c.l.b16 %v408
    %v1261 = vunpack.c.l.b16 %v409
    %v1262 = vunpack.c.l.b16 %v410
    %v1263 = vunpack.c.l.b16 %v411
    %v1264 = vunpack.c.l.b16 %v412
    %v1265 = vunpack.c.l.b16 %v413
    %v1266 = vunpack.c.l.b16 %v414
    %v1267 = vunpack.c.l.b16 %v415
    %v1268 = vunpack.c.l.b16 %v416
    %v1269 = vunpack.c.l.b16 %v417
    %v1270 = vunpack.c.l.b16 %v418
    %v1271 = vunpack.c.l.b16 %v419
    %v1272 = vunpack.c.l.b16 %v420
    %v1273 = vunpack.c.l.b16 %v421
    %v1274 = vunpack.c.l.b16 %v422
    %v1275 = vunpack.c.l.b16 %v423
    %v1276 = vunpack.c.l.b16 %v424
    %v1277 = vunpack.c.l.b16 %v425
    %v1278 = vunpack.c.l.b16 %v426
    %v1279 = vunpack.c.l.b16 %v427
    %v1280 = vunpack.c.l.b16 %v428
    %v1281 = vunpack.c.l.b16 %v429
    %v1282 = vunpack.c.l.b16 %v430
    %v1283 = vunpack.c.l.b16 %v431
    %v1284 = vunpack.c.l.b16 %v432
    %v1285 = vunpack.c.l.b16 %v433
    %v1286 = vunpack.c.l.b16 %v434
    %v1287 = vunpack.c.l.b16 %v435
    %v1288 = vunpack.c.l.b16 %v436
    %v1289 = vunpack.c.l.b16 %v437
    %v1290 = vunpack.c.l.b16 %v438
    %v1291 = vunpack.c.l.b16 %v439
    %v1292 = vunpack.c.l.b16 %v440
    %v1293 = vunpack.c.l.b16 %v441
    %v1294 = vunpack.c.l.b16 %v442
    %v1295 = vunpack.c.l.b16 %v443
    %v1296 = vunpack.c.l.b16 %v444
    %v1297 = vunpack.c.l.b16 %v445
    %v1298 = vunpack.c.l.b16 %v446
    %v1299 = vunpack.c.l.b16 %v447
    %v1300 = vunpack.c.l.b16 %v448
    %v1301 = vunpack.c.l.b16 %v449
    %v1302 = vunpack.c.l.b16 %v450
    %v1303 = vpack.c.b16 %v920, %v919
    %v1304 = vpack.c.b16 %v922, %v921
    %v1305 = vpack.c.b16 %v924, %v923
    %v1306 = vpack.c.b16 %v926, %v925
    %v1307 = vpack.c.b16 %v928, %v927
    %v1308 = vpack.c.b16 %v930, %v929
    %v1309 = vpack.c.b16 %v932, %v931
    %v1310 = vpack.c.b16 %v934, %v933
    %v1311 = vpack.c.b16 %v936, %v935
    %v1312 = vpack.c.b16 %v938, %v937
    %v1313 = vpack.c.b16 %v940, %v939
    %v1314 = vpack.c.b16 %v942, %v941
    %v1315 = vpack.c.b16 %v944, %v943
    %v1316 = vpack.c.b16 %v946, %v945
    %v1317 = vpack.c.b16 %v948, %v947
    %v1318 = vpack.c.b16 %v950, %v949
    %v1319 = vpack.c.b16 %v952, %v951
    %v1320 = vpack.c.b16 %v954, %v953
    %v1321 = vpack.c.b16 %v956, %v955
    %v1322 = vpack.c.b16 %v958, %v957
    %v1323 = vpack.c.b16 %v960, %v959
    %v1324 = vpack.c.b16 %v962, %v961
    %v1325 = vpack.c.b16 %v964, %v963
    %v1326 = vpack.c.b16 %v966, %v965
    %v1327 = vpack.c.b16 %v968, %v967
    %v1328 = vpack.c.b16 %v970, %v969
    %v1329 = vpack.c.b16 %v972, %v971
    %v1330 = vpack.c.b16 %v974, %v973
    %v1331 = vpack.c.b16 %v976, %v975
    %v1332 = vpack.c.b16 %v978, %v977
    %v1333 = vpack.c.b16 %v980, %v979
    %v1334 = vpack.c.b16 %v982, %v981
    %v1335 = vpack.c.b16 %v984, %v983
    %v1336 = vpack.c.b16 %v986, %v985
    %v1337 = vpack.c.b16 %v988, %v987
    %v1338 = vpack.c.b16 %v990, %v989
    %v1339 = vpack.c.b16 %v992, %v991
    %v1340 = vpack.c.b16 %v994, %v993
    %v1341 = vpack.c.b16 %v996, %v995
    %v1342 = vpack.c.b16 %v998, %v997
    %v1343 = vpack.c.b16 %v1000, %v999
    %v1344 = vpack.c.b16 %v1002, %v1001
    %v1345 = vpack.c.b16 %v1004, %v1003
    %v1346 = vpack.c.b16 %v1006, %v1005
    %v1347 = vpack.c.b16 %v1008, %v1007
    %v1348 = vpack.c.b16 %v1010, %v1009
    %v1349 = vpack.c.b16 %v1012, %v1011
    %v1350 = vpack.c.b16 %v1014, %v1013
    %v1351 = vpack.c.b16 %v1016, %v1015
    %v1352 = vpack.c.b16 %v1018, %v1017
    %v1353 = vpack.c.b16 %v1020, %v1019
    %v1354 = vpack.c.b16 %v1022, %v1021
    %v1355 = vpack.c.b16 %v1024, %v1023
    %v1356 = vpack.c.b16 %v1026, %v1025
    %v1357 = vpack.c.b16 %v1028, %v1027
    %v1358 = vpack.c.b16 %v1030, %v1029
    %v1359 = vpack.c.b16 %v1032, %v1031
    %v1360 = vpack.c.b16 %v1034, %v1033
    %v1361 = vpack.c.b16 %v1036, %v1035
    %v1362 = vpack.c.b16 %v1038, %v1037
    %v1363 = vpack.c.b16 %v1040, %v1039
    %v1364 = vpack.c.b16 %v1042, %v1041
    %v1365 = vpack.c.b16 %v1044, %v1043
    %v1366 = vpack.c.b16 %v1046, %v1045
    %v1367 = vpack.c.b16 %v1048, %v1047
    %v1368 = vpack.c.b16 %v1050, %v1049
    %v1369 = vpack.c.b16 %v1052, %v1051
    %v1370 = vpack.c.b16 %v1054, %v1053
    %v1371 = vpack.c.b16 %v1056, %v1055
    %v1372 = vpack.c.b16 %v1058, %v1057
    %v1373 = vpack.c.b16 %v1060, %v1059
    %v1374 = vpack.c.b16 %v1062, %v1061
    %v1375 = vpack.c.b16 %v1064, %v1063
    %v1376 = vpack.c.b16 %v1066, %v1065
    %v1377 = vpack.c.b16 %v1068, %v1067
    %v1378 = vpack.c.b16 %v1070, %v1069
    %v1379 = vpack.c.b16 %v1072, %v1071
    %v1380 = vpack.c.b16 %v1074, %v1073
    %v1381 = vpack.c.b16 %v1076, %v1075
    %v1382 = vpack.c.b16 %v1078, %v1077
    %v1383 = vpack.c.b16 %v1080, %v1079
    %v1384 = vpack.c.b16 %v1082, %v1081
    %v1385 = vpack.c.b16 %v1084, %v1083
    %v1386 = vpack.c.b16 %v1086, %v1085
    %v1387 = vpack.c.b16 %v1088, %v1087
    %v1388 = vpack.c.b16 %v1090, %v1089
    %v1389 = vpack.c.b16 %v1092, %v1091
    %v1390 = vpack.c.b16 %v1094, %v1093
    %v1391 = vpack.c.b16 %v1096, %v1095
    %v1392 = vpack.c.b16 %v1098, %v1097
    %v1393 = vpack.c.b16 %v1100, %v1099
    %v1394 = vpack.c.b16 %v1102, %v1101
    %v1395 = vpack.c.b16 %v1104, %v1103
    %v1396 = vpack.c.b16 %v1106, %v1105
    %v1397 = vpack.c.b16 %v1108, %v1107
    %v1398 = vpack.c.b16 %v1110, %v1109
    %v1399 = vpack.c.b16 %v1112, %v1111
    %v1400 = vpack.c.b16 %v1114, %v1113
    %v1401 = vpack.c.b16 %v1116, %v1115
    %v1402 = vpack.c.b16 %v1118, %v1117
    %v1403 = vpack.c.b16 %v1120, %v1119
    %v1404 = vpack.c.b16 %v1122, %v1121
    %v1405 = vpack.c.b16 %v1124, %v1123
    %v1406 = vpack.c.b16 %v1126, %v1125
    %v1407 = vpack.c.b16 %v1128, %v1127
    %v1408 = vpack.c.b16 %v1130, %v1129
    %v1409 = vpack.c.b16 %v1132, %v1131
    %v1410 = vpack.c.b16 %v1134, %v1133
    %v1411 = vpack.c.b16 %v1136, %v1135
    %v1412 = vpack.c.b16 %v1138, %v1137
    %v1413 = vpack.c.b16 %v1140, %v1139
    %v1414 = vpack.c.b16 %v1142, %v1141
    %v1415 = vpack.c.b16 %v1144, %v1143
    %v1416 = vpack.c.b16 %v1146, %v1145
    %v1417 = vpack.c.b16 %v1148, %v1147
    %v1418 = vpack.c.b16 %v1150, %v1149
    %v1419 = vpack.c.b16 %v1152, %v1151
    %v1420 = vpack.c.b16 %v1154, %v1153
    %v1421 = vpack.c.b16 %v1156, %v1155
    %v1422 = vpack.c.b16 %v1158, %v1157
    %v1423 = vpack.c.b16 %v1160, %v1159
    %v1424 = vpack.c.b16 %v1162, %v1161
    %v1425 = vpack.c.b16 %v1164, %v1163
    %v1426 = vpack.c.b16 %v1166, %v1165
    %v1427 = vpack.c.b16 %v1168, %v1167
    %v1428 = vpack.c.b16 %v1170, %v1169
    %v1429 = vpack.c.b16 %v1172, %v1171
    %v1430 = vpack.c.b16 %v1174, %v1173
    %v1431 = vpack.c.b16 %v1176, %v1175
    %v1432 = vpack.c.b16 %v1178, %v1177
    %v1433 = vpack.c.b16 %v1180, %v1179
    %v1434 = vpack.c.b16 %v1182, %v1181
    %v1435 = vpack.c.b16 %v1184, %v1183
    %v1436 = vpack.c.b16 %v1186, %v1185
    %v1437 = vpack.c.b16 %v1188, %v1187
    %v1438 = vpack.c.b16 %v1190, %v1189
    %v1439 = vpack.c.b16 %v1192, %v1191
    %v1440 = vpack.c.b16 %v1194, %v1193
    %v1441 = vpack.c.b16 %v1196, %v1195
    %v1442 = vpack.c.b16 %v1198, %v1197
    %v1443 = vpack.c.b16 %v1200, %v1199
    %v1444 = vpack.c.b16 %v1202, %v1201
    %v1445 = vpack.c.b16 %v1204, %v1203
    %v1446 = vpack.c.b16 %v1206, %v1205
    %v1447 = vpack.c.b16 %v1208, %v1207
    %v1448 = vpack.c.b16 %v1210, %v1209
    %v1449 = vpack.c.b16 %v1212, %v1211
    %v1450 = vpack.c.b16 %v1214, %v1213
    %v1451 = vpack.c.b16 %v1216, %v1215
    %v1452 = vpack.c.b16 %v1218, %v1217
    %v1453 = vpack.c.b16 %v1220, %v1219
    %v1454 = vpack.c.b16 %v1222, %v1221
    %v1455 = vpack.c.b16 %v1224, %v1223
    %v1456 = vpack.c.b16 %v1226, %v1225
    %v1457 = vpack.c.b16 %v1228, %v1227
    %v1458 = vpack.c.b16 %v1230, %v1229
    %v1459 = vpack.c.b16 %v1232, %v1231
    %v1460 = vpack.c.b16 %v1234, %v1233
    %v1461 = vpack.c.b16 %v1236, %v1235
    %v1462 = vpack.c.b16 %v1238, %v1237
    %v1463 = vpack.c.b16 %v1240, %v1239
    %v1464 = vpack.c.b16 %v1242, %v1241
    %v1465 = vpack.c.b16 %v1244, %v1243
    %v1466 = vpack.c.b16 %v1246, %v1245
    %v1467 = vpack.c.b16 %v1248, %v1247
    %v1468 = vpack.c.b16 %v1250, %v1249
    %v1469 = vpack.c.b16 %v1252, %v1251
    %v1470 = vpack.c.b16 %v1254, %v1253
    %v1471 = vpack.c.b16 %v1256, %v1255
    %v1472 = vpack.c.b16 %v1258, %v1257
    %v1473 = vpack.c.b16 %v1260, %v1259
    %v1474 = vpack.c.b16 %v1262, %v1261
    %v1475 = vpack.c.b16 %v1264, %v1263
    %v1476 = vpack.c.b16 %v1266, %v1265
    %v1477 = vpack.c.b16 %v1268, %v1267
    %v1478 = vpack.c.b16 %v1270, %v1269
    %v1479 = vpack.c.b16 %v1272, %v1271
    %v1480 = vpack.c.b16 %v1274, %v1273
    %v1481 = vpack.c.b16 %v1276, %v1275
    %v1482 = vpack.c.b16 %v1278, %v1277
    %v1483 = vpack.c.b16 %v1280, %v1279
    %v1484 = vpack.c.b16 %v1282, %v1281
    %v1485 = vpack.c.b16 %v1284, %v1283
    %v1486 = vpack.c.b16 %v1286, %v1285
    %v1487 = vpack.c.b16 %v1288, %v1287
    %v1488 = vpack.c.b16 %v1290, %v1289
    %v1489 = vpack.c.b16 %v1292, %v1291
    %v1490 = vpack.c.b16 %v1294, %v1293
    %v1491 = vpack.c.b16 %v1296, %v1295
    %v1492 = vpack.c.b16 %v1298, %v1297
    %v1493 = vpack.c.b16 %v1300, %v1299
    %v1494 = vpack.c.b16 %v1302, %v1301
    %1687 = vmatprep.subr.bf16.mxu0 0
    %1688 = vmatpush1.bf16.msra.mxu0 %v1303
    %1689 = vmatprep.subr.bf16.mxu0 0
    %1690 = vmatpush1.bf16.msra.mxu0 %v1304
    %1691 = vmatprep.subr.bf16.mxu0 0
    %1692 = vmatpush1.bf16.msra.mxu0 %v1305
    %1693 = vmatprep.subr.bf16.mxu0 0
    %1694 = vmatpush1.bf16.msra.mxu0 %v1306
    %1695 = vmatprep.subr.bf16.mxu0 0
    %1696 = vmatpush1.bf16.msra.mxu0 %v1307
    %1697 = vmatprep.subr.bf16.mxu0 0
    %1698 = vmatpush1.bf16.msra.mxu0 %v1308
    %1699 = vmatprep.subr.bf16.mxu0 0
    %1700 = vmatpush1.bf16.msra.mxu0 %v1309
    %1701 = vmatprep.subr.bf16.mxu0 0
    %1702 = vmatpush1.bf16.msra.mxu0 %v1310
    %1703 = vmatprep.subr.bf16.mxu0 0
    %1704 = vmatpush1.bf16.msra.mxu0 %v1311
    %1705 = vmatprep.subr.bf16.mxu0 0
    %1706 = vmatpush1.bf16.msra.mxu0 %v1312
    %1707 = vmatprep.subr.bf16.mxu0 0
    %1708 = vmatpush1.bf16.msra.mxu0 %v1313
    %1709 = vmatprep.subr.bf16.mxu0 0
    %1710 = vmatpush1.bf16.msra.mxu0 %v1314
    %1711 = vmatprep.subr.bf16.mxu0 0
    %1712 = vmatpush1.bf16.msra.mxu0 %v1315
    %1713 = vmatprep.subr.bf16.mxu0 0
    %1714 = vmatpush1.bf16.msra.mxu0 %v1316
    %1715 = vmatprep.subr.bf16.mxu0 0
    %1716 = vmatpush1.bf16.msra.mxu0 %v1317
    %1717 = vmatprep.subr.bf16.mxu0 0
    %1718 = vmatpush1.bf16.msra.mxu0 %v1318
    %1719 = vmatprep.mubr.bf16.mxu0 %v488
    %1720 = vmatmul.mubr.bf16.gmra.mrb[0].mxu0 %v487
    %v1721 = vpop.f32.mrb[0].mxu0
    %v1722 = vadd.f32 0.0, %v1721
    %v1723 = vpop.f32.mrb[0].mxu0
    %v1724 = vpop.f32.mrb[0].mxu0
    %v1725 = vpop.f32.mrb[0].mxu0
    %1726 = vdwg.mxu0
    %1727 = vmatprep.subr.bf16.mxu0 0
    %1728 = vmatpush1.bf16.msra.mxu0 %v1319
    %1729 = vmatprep.subr.bf16.mxu0 0
    %1730 = vmatpush1.bf16.msra.mxu0 %v1320
    %1731 = vmatprep.subr.bf16.mxu0 0
    %1732 = vmatpush1.bf16.msra.mxu0 %v1321
    %1733 = vmatprep.subr.bf16.mxu0 0
    %1734 = vmatpush1.bf16.msra.mxu0 %v1322
    %1735 = vmatprep.subr.bf16.mxu0 0
    %1736 = vmatpush1.bf16.msra.mxu0 %v1323
    %1737 = vmatprep.subr.bf16.mxu0 0
    %1738 = vmatpush1.bf16.msra.mxu0 %v1324
    %1739 = vmatprep.subr.bf16.mxu0 0
    %1740 = vmatpush1.bf16.msra.mxu0 %v1325
    %1741 = vmatprep.subr.bf16.mxu0 0
    %1742 = vmatpush1.bf16.msra.mxu0 %v1326
    %1743 = vmatprep.subr.bf16.mxu0 0
    %1744 = vmatpush1.bf16.msra.mxu0 %v1327
    %1745 = vmatprep.subr.bf16.mxu0 0
    %1746 = vmatpush1.bf16.msra.mxu0 %v1328
    %1747 = vmatprep.subr.bf16.mxu0 0
    %1748 = vmatpush1.bf16.msra.mxu0 %v1329
    %1749 = vmatprep.subr.bf16.mxu0 0
    %1750 = vmatpush1.bf16.msra.mxu0 %v1330
    %1751 = vmatprep.subr.bf16.mxu0 0
    %1752 = vmatpush1.bf16.msra.mxu0 %v1331
    %1753 = vmatprep.subr.bf16.mxu0 0
    %1754 = vmatpush1.bf16.msra.mxu0 %v1332
    %1755 = vmatprep.subr.bf16.mxu0 0
    %1756 = vmatpush1.bf16.msra.mxu0 %v1333
    %1757 = vmatprep.subr.bf16.mxu0 0
    %1758 = vmatpush1.bf16.msra.mxu0 %v1334
    %1759 = vmatprep.mubr.bf16.mxu0 %v490
    %1760 = vmatmul.mubr.bf16.gmra.mrb[0].mxu0 %v489
    %v1761 = vpop.f32.mrb[0].mxu0
    %v1762 = vadd.f32 %v1722, %v1761
    %v1763 = vpop.f32.mrb[0].mxu0
    %v1764 = vpop.f32.mrb[0].mxu0
    %v1765 = vpop.f32.mrb[0].mxu0
    %1766 = vdwg.mxu0
    %1767 = vmatprep.subr.bf16.mxu0 0
    %1768 = vmatpush1.bf16.msra.mxu0 %v1335
    %1769 = vmatprep.subr.bf16.mxu0 0
    %1770 = vmatpush1.bf16.msra.mxu0 %v1336
    %1771 = vmatprep.subr.bf16.mxu0 0
    %1772 = vmatpush1.bf16.msra.mxu0 %v1337
    %1773 = vmatprep.subr.bf16.mxu0 0
    %1774 = vmatpush1.bf16.msra.mxu0 %v1338
    %1775 = vmatprep.subr.bf16.mxu0 0
    %1776 = vmatpush1.bf16.msra.mxu0 %v1339
    %1777 = vmatprep.subr.bf16.mxu0 0
    %1778 = vmatpush1.bf16.msra.mxu0 %v1340
    %1779 = vmatprep.subr.bf16.mxu0 0
    %1780 = vmatpush1.bf16.msra.mxu0 %v1341
    %1781 = vmatprep.subr.bf16.mxu0 0
    %1782 = vmatpush1.bf16.msra.mxu0 %v1342
    %1783 = vmatprep.subr.bf16.mxu0 0
    %1784 = vmatpush1.bf16.msra.mxu0 %v1343
    %1785 = vmatprep.subr.bf16.mxu0 0
    %1786 = vmatpush1.bf16.msra.mxu0 %v1344
    %1787 = vmatprep.subr.bf16.mxu0 0
    %1788 = vmatpush1.bf16.msra.mxu0 %v1345
    %1789 = vmatprep.subr.bf16.mxu0 0
    %1790 = vmatpush1.bf16.msra.mxu0 %v1346
    %1791 = vmatprep.subr.bf16.mxu0 0
    %1792 = vmatpush1.bf16.msra.mxu0 %v1347
    %1793 = vmatprep.subr.bf16.mxu0 0
    %1794 = vmatpush1.bf16.msra.mxu0 %v1348
    %1795 = vmatprep.subr.bf16.mxu0 0
    %1796 = vmatpush1.bf16.msra.mxu0 %v1349
    %1797 = vmatprep.subr.bf16.mxu0 0
    %1798 = vmatpush1.bf16.msra.mxu0 %v1350
    %1799 = vmatprep.mubr.bf16.mxu0 %v492
    %1800 = vmatmul.mubr.bf16.gmra.mrb[0].mxu0 %v491
    %v1801 = vpop.f32.mrb[0].mxu0
    %v1802 = vadd.f32 %v1762, %v1801
    %v1803 = vpop.f32.mrb[0].mxu0
    %v1804 = vpop.f32.mrb[0].mxu0
    %v1805 = vpop.f32.mrb[0].mxu0
    %1806 = vdwg.mxu0
    %1807 = vmatprep.subr.bf16.mxu0 0
    %1808 = vmatpush1.bf16.msra.mxu0 %v1351
    %1809 = vmatprep.subr.bf16.mxu0 0
    %1810 = vmatpush1.bf16.msra.mxu0 %v1352
    %1811 = vmatprep.subr.bf16.mxu0 0
    %1812 = vmatpush1.bf16.msra.mxu0 %v1353
    %1813 = vmatprep.subr.bf16.mxu0 0
    %1814 = vmatpush1.bf16.msra.mxu0 %v1354
    %1815 = vmatprep.subr.bf16.mxu0 0
    %1816 = vmatpush1.bf16.msra.mxu0 %v1355
    %1817 = vmatprep.subr.bf16.mxu0 0
    %1818 = vmatpush1.bf16.msra.mxu0 %v1356
    %1819 = vmatprep.subr.bf16.mxu0 0
    %1820 = vmatpush1.bf16.msra.mxu0 %v1357
    %1821 = vmatprep.subr.bf16.mxu0 0
    %1822 = vmatpush1.bf16.msra.mxu0 %v1358
    %1823 = vmatprep.subr.bf16.mxu0 0
    %1824 = vmatpush1.bf16.msra.mxu0 %v1359
    %1825 = vmatprep.subr.bf16.mxu0 0
    %1826 = vmatpush1.bf16.msra.mxu0 %v1360
    %1827 = vmatprep.subr.bf16.mxu0 0
    %1828 = vmatpush1.bf16.msra.mxu0 %v1361
    %1829 = vmatprep.subr.bf16.mxu0 0
    %1830 = vmatpush1.bf16.msra.mxu0 %v1362
    %1831 = vmatprep.subr.bf16.mxu0 0
    %1832 = vmatpush1.bf16.msra.mxu0 %v1363
    %1833 = vmatprep.subr.bf16.mxu0 0
    %1834 = vmatpush1.bf16.msra.mxu0 %v1364
    %1835 = vmatprep.subr.bf16.mxu0 0
    %1836 = vmatpush1.bf16.msra.mxu0 %v1365
    %1837 = vmatprep.subr.bf16.mxu0 0
    %1838 = vmatpush1.bf16.msra.mxu0 %v1366
    %1839 = vmatprep.mubr.bf16.mxu0 %v494
    %1840 = vmatmul.mubr.bf16.gmra.mrb[0].mxu0 %v493
    %v1841 = vpop.f32.mrb[0].mxu0
    %v1842 = vadd.f32 %v1802, %v1841
    %v1843 = vpop.f32.mrb[0].mxu0
    %v1844 = vpop.f32.mrb[0].mxu0
    %v1845 = vpop.f32.mrb[0].mxu0
    %1846 = vdwg.mxu0
    %1847 = vmatprep.subr.bf16.mxu0 0
    %1848 = vmatpush1.bf16.msra.mxu0 %v1367
    %1849 = vmatprep.subr.bf16.mxu0 0
    %1850 = vmatpush1.bf16.msra.mxu0 %v1368
    %1851 = vmatprep.subr.bf16.mxu0 0
    %1852 = vmatpush1.bf16.msra.mxu0 %v1369
    %1853 = vmatprep.subr.bf16.mxu0 0
    %1854 = vmatpush1.bf16.msra.mxu0 %v1370
    %1855 = vmatprep.subr.bf16.mxu0 0
    %1856 = vmatpush1.bf16.msra.mxu0 %v1371
    %1857 = vmatprep.subr.bf16.mxu0 0
    %1858 = vmatpush1.bf16.msra.mxu0 %v1372
    %1859 = vmatprep.subr.bf16.mxu0 0
    %1860 = vmatpush1.bf16.msra.mxu0 %v1373
    %1861 = vmatprep.subr.bf16.mxu0 0
    %1862 = vmatpush1.bf16.msra.mxu0 %v1374
    %1863 = vmatprep.subr.bf16.mxu0 0
    %1864 = vmatpush1.bf16.msra.mxu0 %v1375
    %1865 = vmatprep.subr.bf16.mxu0 0
    %1866 = vmatpush1.bf16.msra.mxu0 %v1376
    %1867 = vmatprep.subr.bf16.mxu0 0
    %1868 = vmatpush1.bf16.msra.mxu0 %v1377
    %1869 = vmatprep.subr.bf16.mxu0 0
    %1870 = vmatpush1.bf16.msra.mxu0 %v1378
    %1871 = vmatprep.subr.bf16.mxu0 0
    %1872 = vmatpush1.bf16.msra.mxu0 %v1379
    %1873 = vmatprep.subr.bf16.mxu0 0
    %1874 = vmatpush1.bf16.msra.mxu0 %v1380
    %1875 = vmatprep.subr.bf16.mxu0 0
    %1876 = vmatpush1.bf16.msra.mxu0 %v1381
    %1877 = vmatprep.subr.bf16.mxu0 0
    %1878 = vmatpush1.bf16.msra.mxu0 %v1382
    %1879 = vmatprep.mubr.bf16.mxu0 %v496
    %1880 = vmatmul.mubr.bf16.gmra.mrb[0].mxu0 %v495
    %v1881 = vpop.f32.mrb[0].mxu0
    %v1882 = vadd.f32 %v1842, %v1881
    %v1883 = vpop.f32.mrb[0].mxu0
    %v1884 = vpop.f32.mrb[0].mxu0
    %v1885 = vpop.f32.mrb[0].mxu0
    %1886 = vdwg.mxu0
    %1887 = vmatprep.subr.bf16.mxu0 0
    %1888 = vmatpush1.bf16.msra.mxu0 %v1383
    %1889 = vmatprep.subr.bf16.mxu0 0
    %1890 = vmatpush1.bf16.msra.mxu0 %v1384
    %1891 = vmatprep.subr.bf16.mxu0 0
    %1892 = vmatpush1.bf16.msra.mxu0 %v1385
    %1893 = vmatprep.subr.bf16.mxu0 0
    %1894 = vmatpush1.bf16.msra.mxu0 %v1386
    %1895 = vmatprep.subr.bf16.mxu0 0
    %1896 = vmatpush1.bf16.msra.mxu0 %v1387
    %1897 = vmatprep.subr.bf16.mxu0 0
    %1898 = vmatpush1.bf16.msra.mxu0 %v1388
    %1899 = vmatprep.subr.bf16.mxu0 0
    %1900 = vmatpush1.bf16.msra.mxu0 %v1389
    %1901 = vmatprep.subr.bf16.mxu0 0
    %1902 = vmatpush1.bf16.msra.mxu0 %v1390
    %1903 = vmatprep.subr.bf16.mxu0 0
    %1904 = vmatpush1.bf16.msra.mxu0 %v1391
    %1905 = vmatprep.subr.bf16.mxu0 0
    %1906 = vmatpush1.bf16.msra.mxu0 %v1392
    %1907 = vmatprep.subr.bf16.mxu0 0
    %1908 = vmatpush1.bf16.msra.mxu0 %v1393
    %1909 = vmatprep.subr.bf16.mxu0 0
    %1910 = vmatpush1.bf16.msra.mxu0 %v1394
    %1911 = vmatprep.subr.bf16.mxu0 0
    %1912 = vmatpush1.bf16.msra.mxu0 %v1395
    %1913 = vmatprep.subr.bf16.mxu0 0
    %1914 = vmatpush1.bf16.msra.mxu0 %v1396
    %1915 = vmatprep.subr.bf16.mxu0 0
    %1916 = vmatpush1.bf16.msra.mxu0 %v1397
    %1917 = vmatprep.subr.bf16.mxu0 0
    %1918 = vmatpush1.bf16.msra.mxu0 %v1398
    %1919 = vmatprep.mubr.bf16.mxu0 %v498
    %1920 = vmatmul.mubr.bf16.gmra.mrb[0].mxu0 %v497
    %v1921 = vpop.f32.mrb[0].mxu0
    %v1922 = vadd.f32 %v1882, %v1921
    %v1923 = vpop.f32.mrb[0].mxu0
    %v1924 = vpop.f32.mrb[0].mxu0
    %v1925 = vpop.f32.mrb[0].mxu0
    %1926 = vdwg.mxu0
    %1927 = vmatprep.subr.bf16.mxu0 0
    %1928 = vmatpush1.bf16.msra.mxu0 %v1399
    %1929 = vmatprep.subr.bf16.mxu0 0
    %1930 = vmatpush1.bf16.msra.mxu0 %v1400
    %1931 = vmatprep.subr.bf16.mxu0 0
    %1932 = vmatpush1.bf16.msra.mxu0 %v1401
    %1933 = vmatprep.subr.bf16.mxu0 0
    %1934 = vmatpush1.bf16.msra.mxu0 %v1402
    %1935 = vmatprep.subr.bf16.mxu0 0
    %1936 = vmatpush1.bf16.msra.mxu0 %v1403
    %1937 = vmatprep.subr.bf16.mxu0 0
    %1938 = vmatpush1.bf16.msra.mxu0 %v1404
    %1939 = vmatprep.subr.bf16.mxu0 0
    %1940 = vmatpush1.bf16.msra.mxu0 %v1405
    %1941 = vmatprep.subr.bf16.mxu0 0
    %1942 = vmatpush1.bf16.msra.mxu0 %v1406
    %1943 = vmatprep.subr.bf16.mxu0 0
    %1944 = vmatpush1.bf16.msra.mxu0 %v1407
    %1945 = vmatprep.subr.bf16.mxu0 0
    %1946 = vmatpush1.bf16.msra.mxu0 %v1408
    %1947 = vmatprep.subr.bf16.mxu0 0
    %1948 = vmatpush1.bf16.msra.mxu0 %v1409
    %1949 = vmatprep.subr.bf16.mxu0 0
    %1950 = vmatpush1.bf16.msra.mxu0 %v1410
    %1951 = vmatprep.subr.bf16.mxu0 0
    %1952 = vmatpush1.bf16.msra.mxu0 %v1411
    %1953 = vmatprep.subr.bf16.mxu0 0
    %1954 = vmatpush1.bf16.msra.mxu0 %v1412
    %1955 = vmatprep.subr.bf16.mxu0 0
    %1956 = vmatpush1.bf16.msra.mxu0 %v1413
    %1957 = vmatprep.subr.bf16.mxu0 0
    %1958 = vmatpush1.bf16.msra.mxu0 %v1414
    %1959 = vmatprep.mubr.bf16.mxu0 %v500
    %1960 = vmatmul.mubr.bf16.gmra.mrb[0].mxu0 %v499
    %v1961 = vpop.f32.mrb[0].mxu0
    %v1962 = vadd.f32 %v1922, %v1961
    %v1963 = vpop.f32.mrb[0].mxu0
    %v1964 = vpop.f32.mrb[0].mxu0
    %v1965 = vpop.f32.mrb[0].mxu0
    %1966 = vdwg.mxu0
    %1967 = vmatprep.subr.bf16.mxu0 0
    %1968 = vmatpush1.bf16.msra.mxu0 %v1415
    %1969 = vmatprep.subr.bf16.mxu0 0
    %1970 = vmatpush1.bf16.msra.mxu0 %v1416
    %1971 = vmatprep.subr.bf16.mxu0 0
    %1972 = vmatpush1.bf16.msra.mxu0 %v1417
    %1973 = vmatprep.subr.bf16.mxu0 0
    %1974 = vmatpush1.bf16.msra.mxu0 %v1418
    %1975 = vmatprep.subr.bf16.mxu0 0
    %1976 = vmatpush1.bf16.msra.mxu0 %v1419
    %1977 = vmatprep.subr.bf16.mxu0 0
    %1978 = vmatpush1.bf16.msra.mxu0 %v1420
    %1979 = vmatprep.subr.bf16.mxu0 0
    %1980 = vmatpush1.bf16.msra.mxu0 %v1421
    %1981 = vmatprep.subr.bf16.mxu0 0
    %1982 = vmatpush1.bf16.msra.mxu0 %v1422
    %1983 = vmatprep.subr.bf16.mxu0 0
    %1984 = vmatpush1.bf16.msra.mxu0 %v1423
    %1985 = vmatprep.subr.bf16.mxu0 0
    %1986 = vmatpush1.bf16.msra.mxu0 %v1424
    %1987 = vmatprep.subr.bf16.mxu0 0
    %1988 = vmatpush1.bf16.msra.mxu0 %v1425
    %1989 = vmatprep.subr.bf16.mxu0 0
    %1990 = vmatpush1.bf16.msra.mxu0 %v1426
    %1991 = vmatprep.subr.bf16.mxu0 0
    %1992 = vmatpush1.bf16.msra.mxu0 %v1427
    %1993 = vmatprep.subr.bf16.mxu0 0
    %1994 = vmatpush1.bf16.msra.mxu0 %v1428
    %1995 = vmatprep.subr.bf16.mxu0 0
    %1996 = vmatpush1.bf16.msra.mxu0 %v1429
    %1997 = vmatprep.subr.bf16.mxu0 0
    %1998 = vmatpush1.bf16.msra.mxu0 %v1430
    %1999 = vmatprep.mubr.bf16.mxu0 %v502
    %2000 = vmatmul.mubr.bf16.gmra.mrb[0].mxu0 %v501
    %v2001 = vpop.f32.mrb[0].mxu0
    %v2002 = vadd.f32 %v1962, %v2001
    %v2003 = vpop.f32.mrb[0].mxu0
    %v2004 = vpop.f32.mrb[0].mxu0
    %v2005 = vpop.f32.mrb[0].mxu0
    %2006 = vdwg.mxu0
    %2007 = vmatprep.subr.bf16.mxu0 0
    %2008 = vmatpush1.bf16.msra.mxu0 %v1431
    %2009 = vmatprep.subr.bf16.mxu0 0
    %2010 = vmatpush1.bf16.msra.mxu0 %v1432
    %2011 = vmatprep.subr.bf16.mxu0 0
    %2012 = vmatpush1.bf16.msra.mxu0 %v1433
    %2013 = vmatprep.subr.bf16.mxu0 0
    %2014 = vmatpush1.bf16.msra.mxu0 %v1434
    %2015 = vmatprep.subr.bf16.mxu0 0
    %2016 = vmatpush1.bf16.msra.mxu0 %v1435
    %2017 = vmatprep.subr.bf16.mxu0 0
    %2018 = vmatpush1.bf16.msra.mxu0 %v1436
    %2019 = vmatprep.subr.bf16.mxu0 0
    %2020 = vmatpush1.bf16.msra.mxu0 %v1437
    %2021 = vmatprep.subr.bf16.mxu0 0
    %2022 = vmatpush1.bf16.msra.mxu0 %v1438
    %2023 = vmatprep.subr.bf16.mxu0 0
    %2024 = vmatpush1.bf16.msra.mxu0 %v1439
    %2025 = vmatprep.subr.bf16.mxu0 0
    %2026 = vmatpush1.bf16.msra.mxu0 %v1440
    %2027 = vmatprep.subr.bf16.mxu0 0
    %2028 = vmatpush1.bf16.msra.mxu0 %v1441
    %2029 = vmatprep.subr.bf16.mxu0 0
    %2030 = vmatpush1.bf16.msra.mxu0 %v1442
    %2031 = vmatprep.subr.bf16.mxu0 0
    %2032 = vmatpush1.bf16.msra.mxu0 %v1443
    %2033 = vmatprep.subr.bf16.mxu0 0
    %2034 = vmatpush1.bf16.msra.mxu0 %v1444
    %2035 = vmatprep.subr.bf16.mxu0 0
    %2036 = vmatpush1.bf16.msra.mxu0 %v1445
    %2037 = vmatprep.subr.bf16.mxu0 0
    %2038 = vmatpush1.bf16.msra.mxu0 %v1446
    %2039 = vmatprep.mubr.bf16.mxu0 %v504
    %2040 = vmatmul.mubr.bf16.gmra.mrb[0].mxu0 %v503
    %v2041 = vpop.f32.mrb[0].mxu0
    %v2042 = vadd.f32 %v2002, %v2041
    %v2043 = vpop.f32.mrb[0].mxu0
    %v2044 = vpop.f32.mrb[0].mxu0
    %v2045 = vpop.f32.mrb[0].mxu0
    %2046 = vdwg.mxu0
    %2047 = vmatprep.subr.bf16.mxu0 0
    %2048 = vmatpush1.bf16.msra.mxu0 %v1447
    %2049 = vmatprep.subr.bf16.mxu0 0
    %2050 = vmatpush1.bf16.msra.mxu0 %v1448
    %2051 = vmatprep.subr.bf16.mxu0 0
    %2052 = vmatpush1.bf16.msra.mxu0 %v1449
    %2053 = vmatprep.subr.bf16.mxu0 0
    %2054 = vmatpush1.bf16.msra.mxu0 %v1450
    %2055 = vmatprep.subr.bf16.mxu0 0
    %2056 = vmatpush1.bf16.msra.mxu0 %v1451
    %2057 = vmatprep.subr.bf16.mxu0 0
    %2058 = vmatpush1.bf16.msra.mxu0 %v1452
    %2059 = vmatprep.subr.bf16.mxu0 0
    %2060 = vmatpush1.bf16.msra.mxu0 %v1453
    %2061 = vmatprep.subr.bf16.mxu0 0
    %2062 = vmatpush1.bf16.msra.mxu0 %v1454
    %2063 = vmatprep.subr.bf16.mxu0 0
    %2064 = vmatpush1.bf16.msra.mxu0 %v1455
    %2065 = vmatprep.subr.bf16.mxu0 0
    %2066 = vmatpush1.bf16.msra.mxu0 %v1456
    %2067 = vmatprep.subr.bf16.mxu0 0
    %2068 = vmatpush1.bf16.msra.mxu0 %v1457
    %2069 = vmatprep.subr.bf16.mxu0 0
    %2070 = vmatpush1.bf16.msra.mxu0 %v1458
    %2071 = vmatprep.subr.bf16.mxu0 0
    %2072 = vmatpush1.bf16.msra.mxu0 %v1459
    %2073 = vmatprep.subr.bf16.mxu0 0
    %2074 = vmatpush1.bf16.msra.mxu0 %v1460
    %2075 = vmatprep.subr.bf16.mxu0 0
    %2076 = vmatpush1.bf16.msra.mxu0 %v1461
    %2077 = vmatprep.subr.bf16.mxu0 0
    %2078 = vmatpush1.bf16.msra.mxu0 %v1462
    %2079 = vmatprep.mubr.bf16.mxu0 %v506
    %2080 = vmatmul.mubr.bf16.gmra.mrb[0].mxu0 %v505
    %v2081 = vpop.f32.mrb[0].mxu0
    %v2082 = vadd.f32 %v2042, %v2081
    %v2083 = vpop.f32.mrb[0].mxu0
    %v2084 = vpop.f32.mrb[0].mxu0
    %v2085 = vpop.f32.mrb[0].mxu0
    %2086 = vdwg.mxu0
    %2087 = vmatprep.subr.bf16.mxu0 0
    %2088 = vmatpush1.bf16.msra.mxu0 %v1463
    %2089 = vmatprep.subr.bf16.mxu0 0
    %2090 = vmatpush1.bf16.msra.mxu0 %v1464
    %2091 = vmatprep.subr.bf16.mxu0 0
    %2092 = vmatpush1.bf16.msra.mxu0 %v1465
    %2093 = vmatprep.subr.bf16.mxu0 0
    %2094 = vmatpush1.bf16.msra.mxu0 %v1466
    %2095 = vmatprep.subr.bf16.mxu0 0
    %2096 = vmatpush1.bf16.msra.mxu0 %v1467
    %2097 = vmatprep.subr.bf16.mxu0 0
    %2098 = vmatpush1.bf16.msra.mxu0 %v1468
    %2099 = vmatprep.subr.bf16.mxu0 0
    %2100 = vmatpush1.bf16.msra.mxu0 %v1469
    %2101 = vmatprep.subr.bf16.mxu0 0
    %2102 = vmatpush1.bf16.msra.mxu0 %v1470
    %2103 = vmatprep.subr.bf16.mxu0 0
    %2104 = vmatpush1.bf16.msra.mxu0 %v1471
    %2105 = vmatprep.subr.bf16.mxu0 0
    %2106 = vmatpush1.bf16.msra.mxu0 %v1472
    %2107 = vmatprep.subr.bf16.mxu0 0
    %2108 = vmatpush1.bf16.msra.mxu0 %v1473
    %2109 = vmatprep.subr.bf16.mxu0 0
    %2110 = vmatpush1.bf16.msra.mxu0 %v1474
    %2111 = vmatprep.subr.bf16.mxu0 0
    %2112 = vmatpush1.bf16.msra.mxu0 %v1475
    %2113 = vmatprep.subr.bf16.mxu0 0
    %2114 = vmatpush1.bf16.msra.mxu0 %v1476
    %2115 = vmatprep.subr.bf16.mxu0 0
    %2116 = vmatpush1.bf16.msra.mxu0 %v1477
    %2117 = vmatprep.subr.bf16.mxu0 0
    %2118 = vmatpush1.bf16.msra.mxu0 %v1478
    %2119 = vmatprep.mubr.bf16.mxu0 %v508
    %2120 = vmatmul.mubr.bf16.gmra.mrb[0].mxu0 %v507
    %v2121 = vpop.f32.mrb[0].mxu0
    %v2122 = vadd.f32 %v2082, %v2121
    %v2123 = vpop.f32.mrb[0].mxu0
    %v2124 = vpop.f32.mrb[0].mxu0
    %v2125 = vpop.f32.mrb[0].mxu0
    %2126 = vdwg.mxu0
    %2127 = vmatprep.subr.bf16.mxu0 0
    %2128 = vmatpush1.bf16.msra.mxu0 %v1479
    %2129 = vmatprep.subr.bf16.mxu0 0
    %2130 = vmatpush1.bf16.msra.mxu0 %v1480
    %2131 = vmatprep.subr.bf16.mxu0 0
    %2132 = vmatpush1.bf16.msra.mxu0 %v1481
    %2133 = vmatprep.subr.bf16.mxu0 0
    %2134 = vmatpush1.bf16.msra.mxu0 %v1482
    %2135 = vmatprep.subr.bf16.mxu0 0
    %2136 = vmatpush1.bf16.msra.mxu0 %v1483
    %2137 = vmatprep.subr.bf16.mxu0 0
    %2138 = vmatpush1.bf16.msra.mxu0 %v1484
    %2139 = vmatprep.subr.bf16.mxu0 0
    %2140 = vmatpush1.bf16.msra.mxu0 %v1485
    %2141 = vmatprep.subr.bf16.mxu0 0
    %2142 = vmatpush1.bf16.msra.mxu0 %v1486
    %2143 = vmatprep.subr.bf16.mxu0 0
    %2144 = vmatpush1.bf16.msra.mxu0 %v1487
    %2145 = vmatprep.subr.bf16.mxu0 0
    %2146 = vmatpush1.bf16.msra.mxu0 %v1488
    %2147 = vmatprep.subr.bf16.mxu0 0
    %2148 = vmatpush1.bf16.msra.mxu0 %v1489
    %2149 = vmatprep.subr.bf16.mxu0 0
    %2150 = vmatpush1.bf16.msra.mxu0 %v1490
    %2151 = vmatprep.subr.bf16.mxu0 0
    %2152 = vmatpush1.bf16.msra.mxu0 %v1491
    %2153 = vmatprep.subr.bf16.mxu0 0
    %2154 = vmatpush1.bf16.msra.mxu0 %v1492
    %2155 = vmatprep.subr.bf16.mxu0 0
    %2156 = vmatpush1.bf16.msra.mxu0 %v1493
    %2157 = vmatprep.subr.bf16.mxu0 0
    %2158 = vmatpush1.bf16.msra.mxu0 %v1494
    %2159 = vmatprep.mubr.bf16.mxu0 %v510
    %2160 = vmatmul.mubr.bf16.gmra.mrb[0].mxu0 %v509
    %v2161 = vpop.f32.mrb[0].mxu0
    %v2162 = vadd.f32 %v2122, %v2161
    %v2163 = vpop.f32.mrb[0].mxu0
    %v2164 = vpop.f32.mrb[0].mxu0
    %v2165 = vpop.f32.mrb[0].mxu0
    %2166 = vdwg.mxu0
    %v2167 = vpack.c.bf16 %v2162, %v2162
    %v2168 = vld [vmem:[#allocation7] sm:$0xff]
    %v2169 = vld [vmem:[#allocation7 + $0x8] sm:$0xff]
    %v2170 = vld [vmem:[#allocation7 + $0x10] sm:$0xff]
    %v2171 = vld [vmem:[#allocation7 + $0x18] sm:$0xff]
    %v2172 = vld [vmem:[#allocation7 + $0x20] sm:$0xff]
    %v2173 = vld [vmem:[#allocation7 + $0x28] sm:$0xff]
    %v2174 = vld [vmem:[#allocation7 + $0x30] sm:$0xff]
    %v2175 = vld [vmem:[#allocation7 + $0x38] sm:$0xff]
    %v2176 = vld [vmem:[#allocation7 + $0x40] sm:$0xff]
    %v2177 = vld [vmem:[#allocation7 + $0x48] sm:$0xff]
    %v2178 = vld [vmem:[#allocation7 + $0x50] sm:$0xff]
    %v2179 = vld [vmem:[#allocation7 + $0x58] sm:$0xff]
    %v2180 = vld [vmem:[#allocation7 + $0x60] sm:$0xff]
    %v2181 = vld [vmem:[#allocation7 + $0x68] sm:$0xff]
    %v2182 = vld [vmem:[#allocation7 + $0x70] sm:$0xff]
    %v2183 = vld [vmem:[#allocation7 + $0x78] sm:$0xff]
    %v2184 = vld [vmem:[#allocation7 + $0x80] sm:$0xff]
    %v2185 = vld [vmem:[#allocation7 + $0x88] sm:$0xff]
    %v2186 = vld [vmem:[#allocation7 + $0x90] sm:$0xff]
    %v2187 = vld [vmem:[#allocation7 + $0x98] sm:$0xff]
    %v2188 = vld [vmem:[#allocation7 + $0xa0] sm:$0xff]
    %v2189 = vld [vmem:[#allocation7 + $0xa8] sm:$0xff]
    %v2190 = vld [vmem:[#allocation7 + $0xb0] sm:$0xff]
    %v2191 = vld [vmem:[#allocation7 + $0xb8] sm:$0xff]
    %v2192 = vld [vmem:[#allocation7 + $0xc0] sm:$0xff]
    %v2193 = vld [vmem:[#allocation7 + $0xc8] sm:$0xff]
    %v2194 = vld [vmem:[#allocation7 + $0xd0] sm:$0xff]
    %v2195 = vld [vmem:[#allocation7 + $0xd8] sm:$0xff]
    %v2196 = vld [vmem:[#allocation7 + $0xe0] sm:$0xff]
    %v2197 = vld [vmem:[#allocation7 + $0xe8] sm:$0xff]
    %v2198 = vld [vmem:[#allocation7 + $0xf0] sm:$0xff]
    %v2199 = vld [vmem:[#allocation7 + $0xf8] sm:$0xff]
    %v2232 = vunpack.c.l.b16 %v2168
    %v2233 = vunpack.c.h.b16 %v2168
    %v2234 = vunpack.c.l.b16 %v2169
    %v2235 = vunpack.c.h.b16 %v2169
    %v2236 = vunpack.c.l.b16 %v2170
    %v2237 = vunpack.c.h.b16 %v2170
    %v2238 = vunpack.c.l.b16 %v2171
    %v2239 = vunpack.c.h.b16 %v2171
    %v2240 = vunpack.c.l.b16 %v2172
    %v2241 = vunpack.c.h.b16 %v2172
    %v2242 = vunpack.c.l.b16 %v2173
    %v2243 = vunpack.c.h.b16 %v2173
    %v2244 = vunpack.c.l.b16 %v2174
    %v2245 = vunpack.c.h.b16 %v2174
    %v2246 = vunpack.c.l.b16 %v2175
    %v2247 = vunpack.c.h.b16 %v2175
    %v2248 = vunpack.c.l.b16 %v2176
    %v2249 = vunpack.c.h.b16 %v2176
    %v2250 = vunpack.c.l.b16 %v2177
    %v2251 = vunpack.c.h.b16 %v2177
    %v2252 = vunpack.c.l.b16 %v2178
    %v2253 = vunpack.c.h.b16 %v2178
    %v2254 = vunpack.c.l.b16 %v2179
    %v2255 = vunpack.c.h.b16 %v2179
    %v2256 = vunpack.c.l.b16 %v2180
    %v2257 = vunpack.c.h.b16 %v2180
    %v2258 = vunpack.c.l.b16 %v2181
    %v2259 = vunpack.c.h.b16 %v2181
    %v2260 = vunpack.c.l.b16 %v2182
    %v2261 = vunpack.c.h.b16 %v2182
    %v2262 = vunpack.c.l.b16 %v2183
    %v2263 = vunpack.c.h.b16 %v2183
    %v2264 = vunpack.c.l.b16 %v2184
    %v2265 = vunpack.c.h.b16 %v2184
    %v2266 = vunpack.c.l.b16 %v2185
    %v2267 = vunpack.c.h.b16 %v2185
    %v2268 = vunpack.c.l.b16 %v2186
    %v2269 = vunpack.c.h.b16 %v2186
    %v2270 = vunpack.c.l.b16 %v2187
    %v2271 = vunpack.c.h.b16 %v2187
    %v2272 = vunpack.c.l.b16 %v2188
    %v2273 = vunpack.c.h.b16 %v2188
    %v2274 = vunpack.c.l.b16 %v2189
    %v2275 = vunpack.c.h.b16 %v2189
    %v2276 = vunpack.c.l.b16 %v2190
    %v2277 = vunpack.c.h.b16 %v2190
    %v2278 = vunpack.c.l.b16 %v2191
    %v2279 = vunpack.c.h.b16 %v2191
    %v2280 = vunpack.c.l.b16 %v2192
    %v2281 = vunpack.c.h.b16 %v2192
    %v2282 = vunpack.c.l.b16 %v2193
    %v2283 = vunpack.c.h.b16 %v2193
    %v2284 = vunpack.c.l.b16 %v2194
    %v2285 = vunpack.c.h.b16 %v2194
    %v2286 = vunpack.c.l.b16 %v2195
    %v2287 = vunpack.c.h.b16 %v2195
    %v2288 = vunpack.c.l.b16 %v2196
    %v2289 = vunpack.c.h.b16 %v2196
    %v2290 = vunpack.c.l.b16 %v2197
    %v2291 = vunpack.c.h.b16 %v2197
    %v2292 = vunpack.c.l.b16 %v2198
    %v2293 = vunpack.c.h.b16 %v2198
    %v2294 = vunpack.c.l.b16 %v2199
    %v2295 = vunpack.c.h.b16 %v2199
    %v2296 = vpack.c.b16 %v2236, %v2232
    %v2297 = vpack.c.b16 %v2237, %v2233
    %v2298 = vpack.c.b16 %v2238, %v2234
    %v2299 = vpack.c.b16 %v2239, %v2235
    %v2300 = vpack.c.b16 %v2244, %v2240
    %v2301 = vpack.c.b16 %v2245, %v2241
    %v2302 = vpack.c.b16 %v2246, %v2242
    %v2303 = vpack.c.b16 %v2247, %v2243
    %v2304 = vpack.c.b16 %v2252, %v2248
    %v2305 = vpack.c.b16 %v2253, %v2249
    %v2306 = vpack.c.b16 %v2254, %v2250
    %v2307 = vpack.c.b16 %v2255, %v2251
    %v2308 = vpack.c.b16 %v2260, %v2256
    %v2309 = vpack.c.b16 %v2261, %v2257
    %v2310 = vpack.c.b16 %v2262, %v2258
    %v2311 = vpack.c.b16 %v2263, %v2259
    %v2312 = vpack.c.b16 %v2268, %v2264
    %v2313 = vpack.c.b16 %v2269, %v2265
    %v2314 = vpack.c.b16 %v2270, %v2266
    %v2315 = vpack.c.b16 %v2271, %v2267
    %v2316 = vpack.c.b16 %v2276, %v2272
    %v2317 = vpack.c.b16 %v2277, %v2273
    %v2318 = vpack.c.b16 %v2278, %v2274
    %v2319 = vpack.c.b16 %v2279, %v2275
    %v2320 = vpack.c.b16 %v2284, %v2280
    %v2321 = vpack.c.b16 %v2285, %v2281
    %v2322 = vpack.c.b16 %v2286, %v2282
    %v2323 = vpack.c.b16 %v2287, %v2283
    %v2324 = vpack.c.b16 %v2292, %v2288
    %v2325 = vpack.c.b16 %v2293, %v2289
    %v2326 = vpack.c.b16 %v2294, %v2290
    %v2327 = vpack.c.b16 %v2295, %v2291
    %2360 = vmatprep.subr.bf16.mxu0 %v2297
    %2361 = vmatpush1.bf16.msra.mxu0 %v2296
    %2362 = vmatprep.subr.bf16.mxu0 %v2301
    %2363 = vmatpush1.bf16.msra.mxu0 %v2300
    %2364 = vmatprep.subr.bf16.mxu0 %v2305
    %2365 = vmatpush1.bf16.msra.mxu0 %v2304
    %2366 = vmatprep.subr.bf16.mxu0 %v2309
    %2367 = vmatpush1.bf16.msra.mxu0 %v2308
    %2368 = vmatprep.subr.bf16.mxu0 %v2313
    %2369 = vmatpush1.bf16.msra.mxu0 %v2312
    %2370 = vmatprep.subr.bf16.mxu0 %v2317
    %2371 = vmatpush1.bf16.msra.mxu0 %v2316
    %2372 = vmatprep.subr.bf16.mxu0 %v2321
    %2373 = vmatpush1.bf16.msra.mxu0 %v2320
    %2374 = vmatprep.subr.bf16.mxu0 %v2325
    %2375 = vmatpush1.bf16.msra.mxu0 %v2324
    %2376 = vmatprep.subr.bf16.mxu0 0
    %2377 = vmatpush1.bf16.msra.mxu0 0
    %2378 = vmatprep.subr.bf16.mxu0 0
    %2379 = vmatpush1.bf16.msra.mxu0 0
    %2380 = vmatprep.subr.bf16.mxu0 0
    %2381 = vmatpush1.bf16.msra.mxu0 0
    %2382 = vmatprep.subr.bf16.mxu0 0
    %2383 = vmatpush1.bf16.msra.mxu0 0
    %2384 = vmatprep.subr.bf16.mxu0 0
    %2385 = vmatpush1.bf16.msra.mxu0 0
    %2386 = vmatprep.subr.bf16.mxu0 0
    %2387 = vmatpush1.bf16.msra.mxu0 0
    %2388 = vmatprep.subr.bf16.mxu0 0
    %2389 = vmatpush1.bf16.msra.mxu0 0
    %2390 = vmatprep.subr.bf16.mxu0 0
    %2391 = vmatpush1.bf16.msra.mxu0 0
    %2392 = vmatprep.mubr.bf16.mxu0 0
    %2393 = vmatmul.mubr.bf16.gmra.mrb[0].mxu0 %v2167
    %v2394 = vpop.f32.mrb[0].mxu0
    %v2395 = vadd.f32 0.0, %v2394
    %v2396 = vpop.f32.mrb[0].mxu0
    %v2397 = vadd.f32 0.0, %v2396
    %v2398 = vpop.f32.mrb[0].mxu0
    %v2399 = vpop.f32.mrb[0].mxu0
    %2400 = vdwg.mxu0
    %2401 = vmatprep.subr.bf16.mxu0 %v2299
    %2402 = vmatpush1.bf16.msra.mxu0 %v2298
    %2403 = vmatprep.subr.bf16.mxu0 %v2303
    %2404 = vmatpush1.bf16.msra.mxu0 %v2302
    %2405 = vmatprep.subr.bf16.mxu0 %v2307
    %2406 = vmatpush1.bf16.msra.mxu0 %v2306
    %2407 = vmatprep.subr.bf16.mxu0 %v2311
    %2408 = vmatpush1.bf16.msra.mxu0 %v2310
    %2409 = vmatprep.subr.bf16.mxu0 %v2315
    %2410 = vmatpush1.bf16.msra.mxu0 %v2314
    %2411 = vmatprep.subr.bf16.mxu0 %v2319
    %2412 = vmatpush1.bf16.msra.mxu0 %v2318
    %2413 = vmatprep.subr.bf16.mxu0 %v2323
    %2414 = vmatpush1.bf16.msra.mxu0 %v2322
    %2415 = vmatprep.subr.bf16.mxu0 %v2327
    %2416 = vmatpush1.bf16.msra.mxu0 %v2326
    %2417 = vmatprep.subr.bf16.mxu0 0
    %2418 = vmatpush1.bf16.msra.mxu0 0
    %2419 = vmatprep.subr.bf16.mxu0 0
    %2420 = vmatpush1.bf16.msra.mxu0 0
    %2421 = vmatprep.subr.bf16.mxu0 0
    %2422 = vmatpush1.bf16.msra.mxu0 0
    %2423 = vmatprep.subr.bf16.mxu0 0
    %2424 = vmatpush1.bf16.msra.mxu0 0
    %2425 = vmatprep.subr.bf16.mxu0 0
    %2426 = vmatpush1.bf16.msra.mxu0 0
    %2427 = vmatprep.subr.bf16.mxu0 0
    %2428 = vmatpush1.bf16.msra.mxu0 0
    %2429 = vmatprep.subr.bf16.mxu0 0
    %2430 = vmatpush1.bf16.msra.mxu0 0
    %2431 = vmatprep.subr.bf16.mxu0 0
    %2432 = vmatpush1.bf16.msra.mxu0 0
    %2433 = vmatprep.mubr.bf16.mxu0 0
    %2434 = vmatmul.mubr.bf16.gmra.mrb[0].mxu0 %v2167
    %v2435 = vpop.f32.mrb[0].mxu0
    %v2436 = vadd.f32 0.0, %v2435
    %v2437 = vpop.f32.mrb[0].mxu0
    %v2438 = vadd.f32 0.0, %v2437
    %v2439 = vpop.f32.mrb[0].mxu0
    %v2440 = vpop.f32.mrb[0].mxu0
    %2441 = vdwg.mxu0
    %v2442 = vpack.c.bf16 %v2395, %v2395
    %v2443 = vpack.c.bf16 %v2397, %v2397
    %v2444 = vpack.c.bf16 %v2436, %v2436
    %v2445 = vpack.c.bf16 %v2438, %v2438
    %v2450 = vunpack.c.l.b16 %v2442
    %v2451 = vunpack.c.l.b16 %v2443
    %v2452 = vunpack.c.l.b16 %v2444
    %v2453 = vunpack.c.l.b16 %v2445
    %v2454 = vpack.c.b16 %v2451, %v2450
    %v2455 = vpack.c.b16 %v2453, %v2452
    %2458 = vst [vmem:[#allocation8] sm:$0xff] %v2454
    %2459 = vst [vmem:[#allocation8 + $0x8] sm:$0xff] %v2455
    // Predicated region
    $region26: #{tpu_custom_call.1} parent=1 // pred_check
      _
    $region27: #{tpu_custom_call.1} parent=1 // pred_check_branch
      %2461 = sbr.rel (0) target = $region29
    $region28: #{tpu_custom_call.1} parent=1 // pred_region
      %s2463 = ssub.s32 256, 256
      %2464 = vsyncadd [#allocation4], %s2463
      %s2466 = sshll.u32 [#allocation8], 4
      %s2467 = int_to_ptr.vmem [resolvable:$true] %s2466
      %2469 = dma.vmem_to_hbm [thread:$0]  %s2467, 256, %s3, [#allocation4]
    $region29: #{tpu_custom_call.1} parent=1 // pred_fallthru
      _
    // Predicated region
    $region30: #{tpu_custom_call.1} parent=1 // pred_check
      _
    $region31: #{tpu_custom_call.1} parent=1 // pred_check_branch
      %2471 = sbr.rel (0) target = $region33
    $region32: #{tpu_custom_call.1} parent=1 // pred_region
      %2472 = dma.done [#allocation4], 256
    $region33: #{tpu_custom_call.1} parent=1 // pred_fallthru
      _
    %2473 = vsyncpa [#allocation3], 1
    %2474 = vsyncpa [#allocation6], 1
    %2475 = vsyncpa [#allocation4], 1

</llo_original>
